<compile_context>
chip_gen: v5e
topology: v5e:2x2
jax: 0.10.0
libtpu: 0.0.40
codegen_flags: <defaults>
</compile_context>

<pallas_src>
import functools

import jax
import jax.numpy as jnp
from jax.experimental import pallas as pl
from jax.experimental.pallas import tpu as pltpu

HIDDEN = 128  # fixed by the PyTorch module: nn.LSTM(embedding_dim, 128)


def _sigmoid_fast(x):
    # sigmoid(x) = 0.5 * (tanh(x/2) + 1): one EUP push; the scale/adds go to the VPU.
    return 0.5 * jnp.tanh(0.5 * x) + 0.5


def _lstm_disc_kernel(x_ref, wih_ref, whh_ref, b_ref, fcw_ref, fcb_ref,
                      out_ref, h_sc, c_sc, hsum_sc, xg_sc,
                      *, t_chunk, b_chunk, seq_len, needs_mask):
    H = HIDDEN
    tc = pl.program_id(1)

    # ---- per-batch-chunk init of the carried recurrent state ---------------------------
    @pl.when(tc == 0)
    def _():
        h_sc[...] = jnp.zeros_like(h_sc)
        c_sc[...] = jnp.zeros_like(c_sc)
        hsum_sc[...] = jnp.zeros_like(hsum_sc)

    # ---- hoisted, time-parallel input projection for this time chunk -------------------
    # One (t_chunk*b_chunk, E) x (E, 4H) MXU matmul instead of t_chunk tiny ones on the
    # serial critical path.  Fused bias (b_ih + b_hh) added once here.
    x = x_ref[...].reshape(t_chunk * b_chunk, -1)                     # bf16, tile-aligned merge
    xg_sc[...] = (jnp.dot(x, wih_ref[...], preferred_element_type=jnp.float32)
                  + b_ref[...])                                       # (t_chunk*b_chunk, 4H) f32

    whh = whh_ref[...]                                                # (H, 4H) bf16, hoisted
    t0 = tc * t_chunk

    # ---- time recurrence: per step one (b_chunk,H)x(H,4H) MXU matmul + f32 gates --------
    def step(t, carry):
        h, c, hsum = carry
        row = pl.multiple_of(t * b_chunk, 8)                          # b_chunk % 16 == 0
        gates = xg_sc[pl.ds(row, b_chunk), :] + jnp.dot(
            h.astype(jnp.bfloat16), whh, preferred_element_type=jnp.float32)
        i_g = _sigmoid_fast(gates[:, 0 * H:1 * H])
        f_g = _sigmoid_fast(gates[:, 1 * H:2 * H])
        g_g = jnp.tanh(gates[:, 2 * H:3 * H])
        o_g = _sigmoid_fast(gates[:, 3 * H:4 * H])
        c_new = f_g * c + i_g * g_g
        h_new = o_g * jnp.tanh(c_new)
        if needs_mask:
            valid = (t0 + t) < seq_len                                # mask padded tail steps
            h_new = jnp.where(valid, h_new, h)
            c_new = jnp.where(valid, c_new, c)
            hsum = jnp.where(valid, hsum + h_new, hsum)
        else:
            hsum = hsum + h_new
        return h_new, c_new, hsum

    h, c, hsum = jax.lax.fori_loop(
        0, t_chunk, step, (h_sc[...], c_sc[...], hsum_sc[...]),
        unroll=min(t_chunk, 4))
    h_sc[...] = h
    c_sc[...] = c
    hsum_sc[...] = hsum

    # ---- finalize: mean over (true) time + Linear(128->1) as a VPU lane reduce + sigmoid
    @pl.when(tc == pl.num_programs(1) - 1)
    def _():
        h_mean = hsum * (1.0 / seq_len)                               # (b_chunk, H)
        logit = jnp.sum(h_mean * fcw_ref[...], axis=-1, keepdims=True) + fcb_ref[...]
        out_ref[...] = jax.nn.sigmoid(logit)


def _round_up(x, m):
    return ((x + m - 1) // m) * m


def discriminator_forward(token_ids, params, *, time_chunk=32, max_batch_chunk=128):
    """token_ids: (B, T) int32.  Returns (B, 1) float32 in [0, 1]."""
    H = HIDDEN
    B, T = token_ids.shape
    emb = params["embedding"].astype(jnp.bfloat16)        # cast table once -> gather is MXU dtype
    E = emb.shape[1]

    # Batch chunk: multiple of 16 (bf16 sublane tile) so the in-kernel (t,b,E)->(t*b,E)
    # merge and the f32 per-step gate slices stay tile-aligned; capped at the MXU height.
    b_chunk = min(_round_up(B, 16), max_batch_chunk)
    n_b = -(-B // b_chunk)
    B_pad = n_b * b_chunk

    t_chunk = max(1, min(time_chunk, T))
    n_t = -(-T // t_chunk)
    T_pad = n_t * t_chunk

    # Pad the int ids (cheap) instead of the (T,B,E) float tensor, then gather time-major.
    ids = jnp.pad(token_ids, ((0, B_pad - B), (0, T_pad - T)))
    x_tbe = jnp.take(emb, ids.T, axis=0)                  # (T_pad, B_pad, E) bf16, time-major

    wih_t = params["w_ih"].T.astype(jnp.bfloat16)         # (E, 4H)  bf16 MXU operand
    whh_t = params["w_hh"].T.astype(jnp.bfloat16)         # (H, 4H)  bf16 MXU operand
    b = (params["b_ih"] + params["b_hh"]).reshape(1, 4 * H).astype(jnp.float32)
    fcw = params["fc_w"].reshape(1, H).astype(jnp.float32)
    fcb = params["fc_b"].reshape(1, 1).astype(jnp.float32)

    kernel = functools.partial(
        _lstm_disc_kernel, t_chunk=t_chunk, b_chunk=b_chunk, seq_len=T,
        needs_mask=(T_pad != T))

    out = pl.pallas_call(
        kernel,
        out_shape=jax.ShapeDtypeStruct((B_pad, 1), jnp.float32),
        grid=(n_b, n_t),
        in_specs=[
            pl.BlockSpec((t_chunk, b_chunk, E), lambda bi, ti: (ti, bi, 0)),  # x chunk
            pl.BlockSpec((E, 4 * H), lambda bi, ti: (0, 0)),                  # W_ih^T
            pl.BlockSpec((H, 4 * H), lambda bi, ti: (0, 0)),                  # W_hh^T
            pl.BlockSpec((1, 4 * H), lambda bi, ti: (0, 0)),                  # fused bias
            pl.BlockSpec((1, H), lambda bi, ti: (0, 0)),                      # fc weight row
            pl.BlockSpec((1, 1), lambda bi, ti: (0, 0)),                      # fc bias
        ],
        out_specs=pl.BlockSpec((b_chunk, 1), lambda bi, ti: (bi, 0)),
        scratch_shapes=[
            pltpu.VMEM((b_chunk, H), jnp.float32),                    # carried h
            pltpu.VMEM((b_chunk, H), jnp.float32),                    # carried c
            pltpu.VMEM((b_chunk, H), jnp.float32),                    # carried sum_t h_t
            pltpu.VMEM((t_chunk * b_chunk, 4 * H), jnp.float32),      # per-chunk gate buffer
        ],
        compiler_params=pltpu.CompilerParams(
            dimension_semantics=("parallel", "arbitrary"),
            vmem_limit_bytes=48 * 1024 * 1024),                       # within v7x's 64 MiB
    )(x_tbe, wih_t, whh_t, b, fcw, fcb)
    return out[:B]


def init_params(key, vocab_size, embedding_dim):
    ks = jax.random.split(key, 7)
    s = 0.1
    return {
        "embedding": s * jax.random.normal(ks[0], (vocab_size, embedding_dim), jnp.float32),
        "w_ih": s * jax.random.normal(ks[1], (4 * HIDDEN, embedding_dim), jnp.float32),
        "w_hh": s * jax.random.normal(ks[2], (4 * HIDDEN, HIDDEN), jnp.float32),
        "b_ih": s * jax.random.normal(ks[3], (4 * HIDDEN,), jnp.float32),
        "b_hh": s * jax.random.normal(ks[4], (4 * HIDDEN,), jnp.float32),
        "fc_w": s * jax.random.normal(ks[5], (1, HIDDEN), jnp.float32),
        "fc_b": s * jax.random.normal(ks[6], (1,), jnp.float32),
    }


def _reference_forward(token_ids, params):
    """Pure-JAX f32 reference mirroring the PyTorch forward."""
    x = jnp.take(params["embedding"], token_ids, axis=0)              # (B, T, E)
    B, T, _ = x.shape
    h = jnp.zeros((B, HIDDEN), jnp.float32)
    c = jnp.zeros((B, HIDDEN), jnp.float32)
    outs = []
    for t in range(T):
        gates = (x[:, t] @ params["w_ih"].T + params["b_ih"]
                 + h @ params["w_hh"].T + params["b_hh"])
        i_g = jax.nn.sigmoid(gates[:, 0 * HIDDEN:1 * HIDDEN])
        f_g = jax.nn.sigmoid(gates[:, 1 * HIDDEN:2 * HIDDEN])
        g_g = jnp.tanh(gates[:, 2 * HIDDEN:3 * HIDDEN])
        o_g = jax.nn.sigmoid(gates[:, 3 * HIDDEN:4 * HIDDEN])
        c = f_g * c + i_g * g_g
        h = o_g * jnp.tanh(c)
        outs.append(h)
    h_mean = jnp.stack(outs, axis=1).mean(axis=1)
    logit = h_mean @ params["fc_w"].T + params["fc_b"]
    return jax.nn.sigmoid(logit)


if __name__ == "__main__":
    key = jax.random.PRNGKey(0)
    vocab_size = 32
    embedding_dim = 50
    batch, seq = 2, 10

    kp, kx = jax.random.split(key)
    params = init_params(kp, vocab_size, embedding_dim)
    token_ids = jax.random.randint(kx, (batch, seq), 0, vocab_size, dtype=jnp.int32)

    # time_chunk=4 -> 3 time chunks (last one partially padded): exercises the chunked
    # grid, the carried h/c/hsum scratch across time chunks, and the tail-step masking.
    out = discriminator_forward(token_ids, params, time_chunk=4)
    out = jax.block_until_ready(out)

    ref = _reference_forward(token_ids, params)
    assert out.shape == (batch, 1)
    # bf16 MXU operands + tanh-form sigmoids => looser tolerance than pure f32.
    assert jnp.allclose(out, ref, atol=2e-2, rtol=2e-2), (out, ref)

    print("KERNEL_OK")
</pallas_src>

<mosaic_0001>
module attributes {stable_mosaic.version = 11 : i64} {
  func.func @_lstm_disc_kernel(%arg0: i32, %arg1: i32, %arg2: memref<4x16x50xbf16, #tpu.memory_space<vmem>>, %arg3: memref<50x512xbf16, #tpu.memory_space<vmem>>, %arg4: memref<128x512xbf16, #tpu.memory_space<vmem>>, %arg5: memref<1x512xf32, #tpu.memory_space<vmem>>, %arg6: memref<1x128xf32, #tpu.memory_space<vmem>>, %arg7: memref<1x1xf32, #tpu.memory_space<vmem>>, %arg8: memref<16x1xf32, #tpu.memory_space<vmem>>, %arg9: memref<16x128xf32, #tpu.memory_space<vmem>>, %arg10: memref<16x128xf32, #tpu.memory_space<vmem>>, %arg11: memref<16x128xf32, #tpu.memory_space<vmem>>, %arg12: memref<64x512xf32, #tpu.memory_space<vmem>>) attributes {dimension_semantics = [#tpu.dimension_semantics<parallel>, #tpu.dimension_semantics<arbitrary>], iteration_bounds = array<i64: 1, 3>, scalar_prefetch = 0 : i64, scratch_operands = 4 : i64, tpu.core_type = #tpu.core_type<tc>, window_params = [{transform_indices = @transform_0, window_bounds = array<i64: 4, 16, 50>}, {pipeline_mode = #tpu.pipeline_mode<synchronous>, transform_indices = @transform_1, window_bounds = array<i64: 50, 512>}, {pipeline_mode = #tpu.pipeline_mode<synchronous>, transform_indices = @transform_2, window_bounds = array<i64: 128, 512>}, {pipeline_mode = #tpu.pipeline_mode<synchronous>, transform_indices = @transform_3, window_bounds = array<i64: 1, 512>}, {pipeline_mode = #tpu.pipeline_mode<synchronous>, transform_indices = @transform_4, window_bounds = array<i64: 1, 128>}, {pipeline_mode = #tpu.pipeline_mode<synchronous>, transform_indices = @transform_5, window_bounds = array<i64: 1, 1>}, {transform_indices = @transform_6, window_bounds = array<i64: 16, 1>}]} {
    %c0_i32 = arith.constant 0 : i32
    %0 = arith.cmpi eq, %arg1, %c0_i32 : i32
    %1 = arith.extui %0 : i1 to i32
    %c0_i32_0 = arith.constant 0 : i32
    %2 = arith.cmpi ne, %1, %c0_i32_0 : i32
    scf.if %2 {
      %cst_77 = arith.constant 0.000000e+00 : f32
      %198 = vector.broadcast %cst_77 : f32 to vector<16x128xf32>
      %c0_78 = arith.constant 0 : index
      %c0_79 = arith.constant 0 : index
      %199 = vector.load %arg9[%c0_78, %c0_79] : memref<16x128xf32, #tpu.memory_space<vmem>>, vector<16x128xf32>
      tpu.vector_store %arg9[%c0_78, %c0_79], %198 {strides = array<i32>} : memref<16x128xf32, #tpu.memory_space<vmem>>, vector<16x128xf32>,
      %cst_80 = arith.constant 0.000000e+00 : f32
      %200 = vector.broadcast %cst_80 : f32 to vector<16x128xf32>
      %c0_81 = arith.constant 0 : index
      %c0_82 = arith.constant 0 : index
      %201 = vector.load %arg10[%c0_81, %c0_82] : memref<16x128xf32, #tpu.memory_space<vmem>>, vector<16x128xf32>
      tpu.vector_store %arg10[%c0_81, %c0_82], %200 {strides = array<i32>} : memref<16x128xf32, #tpu.memory_space<vmem>>, vector<16x128xf32>,
      %cst_83 = arith.constant 0.000000e+00 : f32
      %202 = vector.broadcast %cst_83 : f32 to vector<16x128xf32>
      %c0_84 = arith.constant 0 : index
      %c0_85 = arith.constant 0 : index
      %203 = vector.load %arg11[%c0_84, %c0_85] : memref<16x128xf32, #tpu.memory_space<vmem>>, vector<16x128xf32>
      tpu.vector_store %arg11[%c0_84, %c0_85], %202 {strides = array<i32>} : memref<16x128xf32, #tpu.memory_space<vmem>>, vector<16x128xf32>,
    } else {
    }
    %c0 = arith.constant 0 : index
    %c0_1 = arith.constant 0 : index
    %c0_2 = arith.constant 0 : index
    %3 = vector.load %arg2[%c0, %c0_1, %c0_2] : memref<4x16x50xbf16, #tpu.memory_space<vmem>>, vector<4x16x50xbf16>
    %4 = vector.shape_cast %3 : vector<4x16x50xbf16> to vector<64x50xbf16>
    %c0_3 = arith.constant 0 : index
    %c0_4 = arith.constant 0 : index
    %5 = vector.load %arg3[%c0_3, %c0_4] : memref<50x512xbf16, #tpu.memory_space<vmem>>, vector<50x512xbf16>
    %cst = arith.constant dense<0.000000e+00> : vector<64x512xf32>
    %6 = tpu.matmul %4, %5, %cst {dimension_numbers = #tpu.dot_dimension_numbers<[1], [0], [0], [1], [0, 0, 1, 1], [], []>} : vector<64x50xbf16>, vector<50x512xbf16>, vector<64x512xf32> -> vector<64x512xf32>
    %c0_5 = arith.constant 0 : index
    %c0_6 = arith.constant 0 : index
    %7 = vector.load %arg5[%c0_5, %c0_6] : memref<1x512xf32, #tpu.memory_space<vmem>>, vector<1x512xf32>
    %8 = vector.broadcast %7 : vector<1x512xf32> to vector<64x512xf32>
    %9 = arith.addf %6, %8 : vector<64x512xf32>
    %c0_7 = arith.constant 0 : index
    %c0_8 = arith.constant 0 : index
    %10 = vector.load %arg12[%c0_7, %c0_8] : memref<64x512xf32, #tpu.memory_space<vmem>>, vector<64x512xf32>
    tpu.vector_store %arg12[%c0_7, %c0_8], %9 {strides = array<i32>} : memref<64x512xf32, #tpu.memory_space<vmem>>, vector<64x512xf32>,
    %c0_9 = arith.constant 0 : index
    %c0_10 = arith.constant 0 : index
    %11 = vector.load %arg4[%c0_9, %c0_10] : memref<128x512xbf16, #tpu.memory_space<vmem>>, vector<128x512xbf16>
    %c4_i32 = arith.constant 4 : i32
    %12 = arith.muli %arg1, %c4_i32 : i32
    %c0_11 = arith.constant 0 : index
    %c0_12 = arith.constant 0 : index
    %13 = vector.load %arg9[%c0_11, %c0_12] : memref<16x128xf32, #tpu.memory_space<vmem>>, vector<16x128xf32>
    %c0_13 = arith.constant 0 : index
    %c0_14 = arith.constant 0 : index
    %14 = vector.load %arg10[%c0_13, %c0_14] : memref<16x128xf32, #tpu.memory_space<vmem>>, vector<16x128xf32>
    %c0_15 = arith.constant 0 : index
    %c0_16 = arith.constant 0 : index
    %15 = vector.load %arg11[%c0_15, %c0_16] : memref<16x128xf32, #tpu.memory_space<vmem>>, vector<16x128xf32>
    %c0_i32_17 = arith.constant 0 : i32
    %c16_i32 = arith.constant 16 : i32
    %16 = arith.muli %c0_i32_17, %c16_i32 : i32
    %17 = tpu.assume_multiple %16, 8 : i32
    %18 = arith.index_cast %17 : i32 to index
    %c0_18 = arith.constant 0 : index
    %19 = vector.load %arg12[%18, %c0_18] : memref<64x512xf32, #tpu.memory_space<vmem>>, vector<16x512xf32>
    %20 = arith.truncf %13 : vector<16x128xf32> to vector<16x128xbf16>
    %cst_19 = arith.constant dense<0.000000e+00> : vector<16x512xf32>
    %21 = tpu.matmul %20, %11, %cst_19 {dimension_numbers = #tpu.dot_dimension_numbers<[1], [0], [0], [1], [0, 0, 1, 1], [], []>} : vector<16x128xbf16>, vector<128x512xbf16>, vector<16x512xf32> -> vector<16x512xf32>
    %22 = arith.addf %19, %21 : vector<16x512xf32>
    %23 = vector.extract_strided_slice %22 {offsets = [0, 0], sizes = [16, 128], strides = [1, 1]} : vector<16x512xf32> to vector<16x128xf32>
    %cst_20 = arith.constant 5.000000e-01 : f32
    %24 = vector.broadcast %cst_20 : f32 to vector<16x128xf32>
    %25 = arith.mulf %24, %23 : vector<16x128xf32>
    %26 = math.tanh %25 : vector<16x128xf32>
    %cst_21 = arith.constant 5.000000e-01 : f32
    %27 = vector.broadcast %cst_21 : f32 to vector<16x128xf32>
    %28 = arith.mulf %27, %26 : vector<16x128xf32>
    %cst_22 = arith.constant 5.000000e-01 : f32
    %29 = vector.broadcast %cst_22 : f32 to vector<16x128xf32>
    %30 = arith.addf %28, %29 : vector<16x128xf32>
    %31 = vector.extract_strided_slice %22 {offsets = [0, 128], sizes = [16, 128], strides = [1, 1]} : vector<16x512xf32> to vector<16x128xf32>
    %cst_23 = arith.constant 5.000000e-01 : f32
    %32 = vector.broadcast %cst_23 : f32 to vector<16x128xf32>
    %33 = arith.mulf %32, %31 : vector<16x128xf32>
    %34 = math.tanh %33 : vector<16x128xf32>
    %cst_24 = arith.constant 5.000000e-01 : f32
    %35 = vector.broadcast %cst_24 : f32 to vector<16x128xf32>
    %36 = arith.mulf %35, %34 : vector<16x128xf32>
    %cst_25 = arith.constant 5.000000e-01 : f32
    %37 = vector.broadcast %cst_25 : f32 to vector<16x128xf32>
    %38 = arith.addf %36, %37 : vector<16x128xf32>
    %39 = vector.extract_strided_slice %22 {offsets = [0, 256], sizes = [16, 128], strides = [1, 1]} : vector<16x512xf32> to vector<16x128xf32>
    %40 = math.tanh %39 : vector<16x128xf32>
    %41 = vector.extract_strided_slice %22 {offsets = [0, 384], sizes = [16, 128], strides = [1, 1]} : vector<16x512xf32> to vector<16x128xf32>
    %cst_26 = arith.constant 5.000000e-01 : f32
    %42 = vector.broadcast %cst_26 : f32 to vector<16x128xf32>
    %43 = arith.mulf %42, %41 : vector<16x128xf32>
    %44 = math.tanh %43 : vector<16x128xf32>
    %cst_27 = arith.constant 5.000000e-01 : f32
    %45 = vector.broadcast %cst_27 : f32 to vector<16x128xf32>
    %46 = arith.mulf %45, %44 : vector<16x128xf32>
    %cst_28 = arith.constant 5.000000e-01 : f32
    %47 = vector.broadcast %cst_28 : f32 to vector<16x128xf32>
    %48 = arith.addf %46, %47 : vector<16x128xf32>
    %49 = arith.mulf %38, %14 : vector<16x128xf32>
    %50 = arith.mulf %30, %40 : vector<16x128xf32>
    %51 = arith.addf %49, %50 : vector<16x128xf32>
    %52 = math.tanh %51 : vector<16x128xf32>
    %53 = arith.mulf %48, %52 : vector<16x128xf32>
    %54 = arith.addi %12, %c0_i32_17 : i32
    %c10_i32 = arith.constant 10 : i32
    %55 = arith.cmpi slt, %54, %c10_i32 : i32
    %56 = arith.select %55, %53, %13 : vector<16x128xf32>
    %57 = arith.select %55, %51, %14 : vector<16x128xf32>
    %58 = arith.addf %15, %56 : vector<16x128xf32>
    %59 = arith.select %55, %58, %15 : vector<16x128xf32>
    %c1_i32 = arith.constant 1 : i32
    %c16_i32_29 = arith.constant 16 : i32
    %60 = arith.muli %c1_i32, %c16_i32_29 : i32
    %61 = tpu.assume_multiple %60, 8 : i32
    %62 = arith.index_cast %61 : i32 to index
    %c0_30 = arith.constant 0 : index
    %63 = vector.load %arg12[%62, %c0_30] : memref<64x512xf32, #tpu.memory_space<vmem>>, vector<16x512xf32>
    %64 = arith.truncf %56 : vector<16x128xf32> to vector<16x128xbf16>
    %cst_31 = arith.constant dense<0.000000e+00> : vector<16x512xf32>
    %65 = tpu.matmul %64, %11, %cst_31 {dimension_numbers = #tpu.dot_dimension_numbers<[1], [0], [0], [1], [0, 0, 1, 1], [], []>} : vector<16x128xbf16>, vector<128x512xbf16>, vector<16x512xf32> -> vector<16x512xf32>
    %66 = arith.addf %63, %65 : vector<16x512xf32>
    %67 = vector.extract_strided_slice %66 {offsets = [0, 0], sizes = [16, 128], strides = [1, 1]} : vector<16x512xf32> to vector<16x128xf32>
    %cst_32 = arith.constant 5.000000e-01 : f32
    %68 = vector.broadcast %cst_32 : f32 to vector<16x128xf32>
    %69 = arith.mulf %68, %67 : vector<16x128xf32>
    %70 = math.tanh %69 : vector<16x128xf32>
    %cst_33 = arith.constant 5.000000e-01 : f32
    %71 = vector.broadcast %cst_33 : f32 to vector<16x128xf32>
    %72 = arith.mulf %71, %70 : vector<16x128xf32>
    %cst_34 = arith.constant 5.000000e-01 : f32
    %73 = vector.broadcast %cst_34 : f32 to vector<16x128xf32>
    %74 = arith.addf %72, %73 : vector<16x128xf32>
    %75 = vector.extract_strided_slice %66 {offsets = [0, 128], sizes = [16, 128], strides = [1, 1]} : vector<16x512xf32> to vector<16x128xf32>
    %cst_35 = arith.constant 5.000000e-01 : f32
    %76 = vector.broadcast %cst_35 : f32 to vector<16x128xf32>
    %77 = arith.mulf %76, %75 : vector<16x128xf32>
    %78 = math.tanh %77 : vector<16x128xf32>
    %cst_36 = arith.constant 5.000000e-01 : f32
    %79 = vector.broadcast %cst_36 : f32 to vector<16x128xf32>
    %80 = arith.mulf %79, %78 : vector<16x128xf32>
    %cst_37 = arith.constant 5.000000e-01 : f32
    %81 = vector.broadcast %cst_37 : f32 to vector<16x128xf32>
    %82 = arith.addf %80, %81 : vector<16x128xf32>
    %83 = vector.extract_strided_slice %66 {offsets = [0, 256], sizes = [16, 128], strides = [1, 1]} : vector<16x512xf32> to vector<16x128xf32>
    %84 = math.tanh %83 : vector<16x128xf32>
    %85 = vector.extract_strided_slice %66 {offsets = [0, 384], sizes = [16, 128], strides = [1, 1]} : vector<16x512xf32> to vector<16x128xf32>
    %cst_38 = arith.constant 5.000000e-01 : f32
    %86 = vector.broadcast %cst_38 : f32 to vector<16x128xf32>
    %87 = arith.mulf %86, %85 : vector<16x128xf32>
    %88 = math.tanh %87 : vector<16x128xf32>
    %cst_39 = arith.constant 5.000000e-01 : f32
    %89 = vector.broadcast %cst_39 : f32 to vector<16x128xf32>
    %90 = arith.mulf %89, %88 : vector<16x128xf32>
    %cst_40 = arith.constant 5.000000e-01 : f32
    %91 = vector.broadcast %cst_40 : f32 to vector<16x128xf32>
    %92 = arith.addf %90, %91 : vector<16x128xf32>
    %93 = arith.mulf %82, %57 : vector<16x128xf32>
    %94 = arith.mulf %74, %84 : vector<16x128xf32>
    %95 = arith.addf %93, %94 : vector<16x128xf32>
    %96 = math.tanh %95 : vector<16x128xf32>
    %97 = arith.mulf %92, %96 : vector<16x128xf32>
    %98 = arith.addi %12, %c1_i32 : i32
    %c10_i32_41 = arith.constant 10 : i32
    %99 = arith.cmpi slt, %98, %c10_i32_41 : i32
    %100 = arith.select %99, %97, %56 : vector<16x128xf32>
    %101 = arith.select %99, %95, %57 : vector<16x128xf32>
    %102 = arith.addf %59, %100 : vector<16x128xf32>
    %103 = arith.select %99, %102, %59 : vector<16x128xf32>
    %c2_i32 = arith.constant 2 : i32
    %c16_i32_42 = arith.constant 16 : i32
    %104 = arith.muli %c2_i32, %c16_i32_42 : i32
    %105 = tpu.assume_multiple %104, 8 : i32
    %106 = arith.index_cast %105 : i32 to index
    %c0_43 = arith.constant 0 : index
    %107 = vector.load %arg12[%106, %c0_43] : memref<64x512xf32, #tpu.memory_space<vmem>>, vector<16x512xf32>
    %108 = arith.truncf %100 : vector<16x128xf32> to vector<16x128xbf16>
    %cst_44 = arith.constant dense<0.000000e+00> : vector<16x512xf32>
    %109 = tpu.matmul %108, %11, %cst_44 {dimension_numbers = #tpu.dot_dimension_numbers<[1], [0], [0], [1], [0, 0, 1, 1], [], []>} : vector<16x128xbf16>, vector<128x512xbf16>, vector<16x512xf32> -> vector<16x512xf32>
    %110 = arith.addf %107, %109 : vector<16x512xf32>
    %111 = vector.extract_strided_slice %110 {offsets = [0, 0], sizes = [16, 128], strides = [1, 1]} : vector<16x512xf32> to vector<16x128xf32>
    %cst_45 = arith.constant 5.000000e-01 : f32
    %112 = vector.broadcast %cst_45 : f32 to vector<16x128xf32>
    %113 = arith.mulf %112, %111 : vector<16x128xf32>
    %114 = math.tanh %113 : vector<16x128xf32>
    %cst_46 = arith.constant 5.000000e-01 : f32
    %115 = vector.broadcast %cst_46 : f32 to vector<16x128xf32>
    %116 = arith.mulf %115, %114 : vector<16x128xf32>
    %cst_47 = arith.constant 5.000000e-01 : f32
    %117 = vector.broadcast %cst_47 : f32 to vector<16x128xf32>
    %118 = arith.addf %116, %117 : vector<16x128xf32>
    %119 = vector.extract_strided_slice %110 {offsets = [0, 128], sizes = [16, 128], strides = [1, 1]} : vector<16x512xf32> to vector<16x128xf32>
    %cst_48 = arith.constant 5.000000e-01 : f32
    %120 = vector.broadcast %cst_48 : f32 to vector<16x128xf32>
    %121 = arith.mulf %120, %119 : vector<16x128xf32>
    %122 = math.tanh %121 : vector<16x128xf32>
    %cst_49 = arith.constant 5.000000e-01 : f32
    %123 = vector.broadcast %cst_49 : f32 to vector<16x128xf32>
    %124 = arith.mulf %123, %122 : vector<16x128xf32>
    %cst_50 = arith.constant 5.000000e-01 : f32
    %125 = vector.broadcast %cst_50 : f32 to vector<16x128xf32>
    %126 = arith.addf %124, %125 : vector<16x128xf32>
    %127 = vector.extract_strided_slice %110 {offsets = [0, 256], sizes = [16, 128], strides = [1, 1]} : vector<16x512xf32> to vector<16x128xf32>
    %128 = math.tanh %127 : vector<16x128xf32>
    %129 = vector.extract_strided_slice %110 {offsets = [0, 384], sizes = [16, 128], strides = [1, 1]} : vector<16x512xf32> to vector<16x128xf32>
    %cst_51 = arith.constant 5.000000e-01 : f32
    %130 = vector.broadcast %cst_51 : f32 to vector<16x128xf32>
    %131 = arith.mulf %130, %129 : vector<16x128xf32>
    %132 = math.tanh %131 : vector<16x128xf32>
    %cst_52 = arith.constant 5.000000e-01 : f32
    %133 = vector.broadcast %cst_52 : f32 to vector<16x128xf32>
    %134 = arith.mulf %133, %132 : vector<16x128xf32>
    %cst_53 = arith.constant 5.000000e-01 : f32
    %135 = vector.broadcast %cst_53 : f32 to vector<16x128xf32>
    %136 = arith.addf %134, %135 : vector<16x128xf32>
    %137 = arith.mulf %126, %101 : vector<16x128xf32>
    %138 = arith.mulf %118, %128 : vector<16x128xf32>
    %139 = arith.addf %137, %138 : vector<16x128xf32>
    %140 = math.tanh %139 : vector<16x128xf32>
    %141 = arith.mulf %136, %140 : vector<16x128xf32>
    %142 = arith.addi %12, %c2_i32 : i32
    %c10_i32_54 = arith.constant 10 : i32
    %143 = arith.cmpi slt, %142, %c10_i32_54 : i32
    %144 = arith.select %143, %141, %100 : vector<16x128xf32>
    %145 = arith.select %143, %139, %101 : vector<16x128xf32>
    %146 = arith.addf %103, %144 : vector<16x128xf32>
    %147 = arith.select %143, %146, %103 : vector<16x128xf32>
    %c3_i32 = arith.constant 3 : i32
    %c16_i32_55 = arith.constant 16 : i32
    %148 = arith.muli %c3_i32, %c16_i32_55 : i32
    %149 = tpu.assume_multiple %148, 8 : i32
    %150 = arith.index_cast %149 : i32 to index
    %c0_56 = arith.constant 0 : index
    %151 = vector.load %arg12[%150, %c0_56] : memref<64x512xf32, #tpu.memory_space<vmem>>, vector<16x512xf32>
    %152 = arith.truncf %144 : vector<16x128xf32> to vector<16x128xbf16>
    %cst_57 = arith.constant dense<0.000000e+00> : vector<16x512xf32>
    %153 = tpu.matmul %152, %11, %cst_57 {dimension_numbers = #tpu.dot_dimension_numbers<[1], [0], [0], [1], [0, 0, 1, 1], [], []>} : vector<16x128xbf16>, vector<128x512xbf16>, vector<16x512xf32> -> vector<16x512xf32>
    %154 = arith.addf %151, %153 : vector<16x512xf32>
    %155 = vector.extract_strided_slice %154 {offsets = [0, 0], sizes = [16, 128], strides = [1, 1]} : vector<16x512xf32> to vector<16x128xf32>
    %cst_58 = arith.constant 5.000000e-01 : f32
    %156 = vector.broadcast %cst_58 : f32 to vector<16x128xf32>
    %157 = arith.mulf %156, %155 : vector<16x128xf32>
    %158 = math.tanh %157 : vector<16x128xf32>
    %cst_59 = arith.constant 5.000000e-01 : f32
    %159 = vector.broadcast %cst_59 : f32 to vector<16x128xf32>
    %160 = arith.mulf %159, %158 : vector<16x128xf32>
    %cst_60 = arith.constant 5.000000e-01 : f32
    %161 = vector.broadcast %cst_60 : f32 to vector<16x128xf32>
    %162 = arith.addf %160, %161 : vector<16x128xf32>
    %163 = vector.extract_strided_slice %154 {offsets = [0, 128], sizes = [16, 128], strides = [1, 1]} : vector<16x512xf32> to vector<16x128xf32>
    %cst_61 = arith.constant 5.000000e-01 : f32
    %164 = vector.broadcast %cst_61 : f32 to vector<16x128xf32>
    %165 = arith.mulf %164, %163 : vector<16x128xf32>
    %166 = math.tanh %165 : vector<16x128xf32>
    %cst_62 = arith.constant 5.000000e-01 : f32
    %167 = vector.broadcast %cst_62 : f32 to vector<16x128xf32>
    %168 = arith.mulf %167, %166 : vector<16x128xf32>
    %cst_63 = arith.constant 5.000000e-01 : f32
    %169 = vector.broadcast %cst_63 : f32 to vector<16x128xf32>
    %170 = arith.addf %168, %169 : vector<16x128xf32>
    %171 = vector.extract_strided_slice %154 {offsets = [0, 256], sizes = [16, 128], strides = [1, 1]} : vector<16x512xf32> to vector<16x128xf32>
    %172 = math.tanh %171 : vector<16x128xf32>
    %173 = vector.extract_strided_slice %154 {offsets = [0, 384], sizes = [16, 128], strides = [1, 1]} : vector<16x512xf32> to vector<16x128xf32>
    %cst_64 = arith.constant 5.000000e-01 : f32
    %174 = vector.broadcast %cst_64 : f32 to vector<16x128xf32>
    %175 = arith.mulf %174, %173 : vector<16x128xf32>
    %176 = math.tanh %175 : vector<16x128xf32>
    %cst_65 = arith.constant 5.000000e-01 : f32
    %177 = vector.broadcast %cst_65 : f32 to vector<16x128xf32>
    %178 = arith.mulf %177, %176 : vector<16x128xf32>
    %cst_66 = arith.constant 5.000000e-01 : f32
    %179 = vector.broadcast %cst_66 : f32 to vector<16x128xf32>
    %180 = arith.addf %178, %179 : vector<16x128xf32>
    %181 = arith.mulf %170, %145 : vector<16x128xf32>
    %182 = arith.mulf %162, %172 : vector<16x128xf32>
    %183 = arith.addf %181, %182 : vector<16x128xf32>
    %184 = math.tanh %183 : vector<16x128xf32>
    %185 = arith.mulf %180, %184 : vector<16x128xf32>
    %186 = arith.addi %12, %c3_i32 : i32
    %c10_i32_67 = arith.constant 10 : i32
    %187 = arith.cmpi slt, %186, %c10_i32_67 : i32
    %188 = arith.select %187, %185, %144 : vector<16x128xf32>
    %189 = arith.select %187, %183, %145 : vector<16x128xf32>
    %190 = arith.addf %147, %188 : vector<16x128xf32>
    %191 = arith.select %187, %190, %147 : vector<16x128xf32>
    %c4_i32_68 = arith.constant 4 : i32
    %c0_69 = arith.constant 0 : index
    %c0_70 = arith.constant 0 : index
    %192 = vector.load %arg9[%c0_69, %c0_70] : memref<16x128xf32, #tpu.memory_space<vmem>>, vector<16x128xf32>
    tpu.vector_store %arg9[%c0_69, %c0_70], %188 {strides = array<i32>} : memref<16x128xf32, #tpu.memory_space<vmem>>, vector<16x128xf32>,
    %c0_71 = arith.constant 0 : index
    %c0_72 = arith.constant 0 : index
    %193 = vector.load %arg10[%c0_71, %c0_72] : memref<16x128xf32, #tpu.memory_space<vmem>>, vector<16x128xf32>
    tpu.vector_store %arg10[%c0_71, %c0_72], %189 {strides = array<i32>} : memref<16x128xf32, #tpu.memory_space<vmem>>, vector<16x128xf32>,
    %c0_73 = arith.constant 0 : index
    %c0_74 = arith.constant 0 : index
    %194 = vector.load %arg11[%c0_73, %c0_74] : memref<16x128xf32, #tpu.memory_space<vmem>>, vector<16x128xf32>
    tpu.vector_store %arg11[%c0_73, %c0_74], %191 {strides = array<i32>} : memref<16x128xf32, #tpu.memory_space<vmem>>, vector<16x128xf32>,
    %c2_i32_75 = arith.constant 2 : i32
    %195 = arith.cmpi eq, %arg1, %c2_i32_75 : i32
    %196 = arith.extui %195 : i1 to i32
    %c0_i32_76 = arith.constant 0 : i32
    %197 = arith.cmpi ne, %196, %c0_i32_76 : i32
    scf.if %197 {
      %cst_77 = arith.constant 1.000000e-01 : f32
      %198 = vector.broadcast %cst_77 : f32 to vector<16x128xf32>
      %199 = arith.mulf %191, %198 : vector<16x128xf32>
      %c0_78 = arith.constant 0 : index
      %c0_79 = arith.constant 0 : index
      %200 = vector.load %arg6[%c0_78, %c0_79] : memref<1x128xf32, #tpu.memory_space<vmem>>, vector<1x128xf32>
      %201 = vector.broadcast %200 : vector<1x128xf32> to vector<16x128xf32>
      %202 = arith.mulf %199, %201 : vector<16x128xf32>
      %cst_80 = arith.constant dense<0.000000e+00> : vector<16xf32>
      %203 = vector.multi_reduction <add>, %202, %cst_80 [1] : vector<16x128xf32> to vector<16xf32>
      %204 = vector.shape_cast %203 : vector<16xf32> to vector<16x1xf32>
      %c0_81 = arith.constant 0 : index
      %c0_82 = arith.constant 0 : index
      %205 = vector.load %arg7[%c0_81, %c0_82] : memref<1x1xf32, #tpu.memory_space<vmem>>, vector<1x1xf32>
      %206 = vector.broadcast %205 : vector<1x1xf32> to vector<16x1xf32>
      %207 = arith.addf %204, %206 : vector<16x1xf32>
      %208 = arith.negf %207 : vector<16x1xf32>
      %209 = math.exp %208 : vector<16x1xf32>
      %cst_83 = arith.constant 1.000000e+00 : f32
      %210 = vector.broadcast %cst_83 : f32 to vector<16x1xf32>
      %211 = arith.addf %210, %209 : vector<16x1xf32>
      %212 = arith.divf %210, %211 : vector<16x1xf32>
      %c0_84 = arith.constant 0 : index
      %c0_85 = arith.constant 0 : index
      %213 = vector.load %arg8[%c0_84, %c0_85] : memref<16x1xf32, #tpu.memory_space<vmem>>, vector<16x1xf32>
      tpu.vector_store %arg8[%c0_84, %c0_85], %212 {strides = array<i32>} : memref<16x1xf32, #tpu.memory_space<vmem>>, vector<16x1xf32>,
    } else {
    }
    return
  }
  func.func @transform_0(%arg0: i32, %arg1: i32) -> (i32, i32, i32) {
    %c0_i32 = arith.constant 0 : i32
    %c0_i32_0 = arith.constant 0 : i32
    return %arg1, %arg0, %c0_i32 : i32, i32, i32
  }
  func.func @transform_1(%arg0: i32, %arg1: i32) -> (i32, i32) {
    %c0_i32 = arith.constant 0 : i32
    %c0_i32_0 = arith.constant 0 : i32
    %c0_i32_1 = arith.constant 0 : i32
    return %c0_i32, %c0_i32_0 : i32, i32
  }
  func.func @transform_2(%arg0: i32, %arg1: i32) -> (i32, i32) {
    %c0_i32 = arith.constant 0 : i32
    %c0_i32_0 = arith.constant 0 : i32
    %c0_i32_1 = arith.constant 0 : i32
    return %c0_i32, %c0_i32_0 : i32, i32
  }
  func.func @transform_3(%arg0: i32, %arg1: i32) -> (i32, i32) {
    %c0_i32 = arith.constant 0 : i32
    %c0_i32_0 = arith.constant 0 : i32
    %c0_i32_1 = arith.constant 0 : i32
    return %c0_i32, %c0_i32_0 : i32, i32
  }
  func.func @transform_4(%arg0: i32, %arg1: i32) -> (i32, i32) {
    %c0_i32 = arith.constant 0 : i32
    %c0_i32_0 = arith.constant 0 : i32
    %c0_i32_1 = arith.constant 0 : i32
    return %c0_i32, %c0_i32_0 : i32, i32
  }
  func.func @transform_5(%arg0: i32, %arg1: i32) -> (i32, i32) {
    %c0_i32 = arith.constant 0 : i32
    %c0_i32_0 = arith.constant 0 : i32
    %c0_i32_1 = arith.constant 0 : i32
    return %c0_i32, %c0_i32_0 : i32, i32
  }
  func.func @transform_6(%arg0: i32, %arg1: i32) -> (i32, i32) {
    %c0_i32 = arith.constant 0 : i32
    %c0_i32_0 = arith.constant 0 : i32
    return %arg0, %c0_i32 : i32, i32
  }
}

</mosaic_0001>

<llo_original>
// kernel: tpu_custom_call.1
$region0: #{tpu_custom_call.1}
  #allocation0 [shape = 'u32[]', space=smem, size = 0x4, offset = 0x4, fixed_abs, tag = 'smem constant byte address 0x4 - core index']
  #allocation1 [shape = 'u32[72,128]{1,0:T(1,128)}', space=vmem, size = 0x9000, scoped, tag = 'internal scratch']
  #allocation2 [shape = 'f32[16,128]{1,0:T(8,128)}', space=vmem, size = 0x2000, scoped, tag = 'scratch operand']
  #allocation3 [shape = 'f32[16,128]{1,0:T(8,128)}', space=vmem, size = 0x2000, scoped, tag = 'scratch operand']
  #allocation4 [shape = 'f32[16,128]{1,0:T(8,128)}', space=vmem, size = 0x2000, scoped, tag = 'scratch operand']
  #allocation5 [shape = 'f32[64,512]{1,0:T(8,128)}', space=vmem, size = 0x20000, scoped, tag = 'scratch operand']
  #allocation6 [shape = 'f32[1,1]{1,0:T(1,128)S(1)}', space=vmem, size = 0x200, scoped, tag = 'scoped memory for tpu_custom_call.1']
  %s0 = inlined_call_operand.hbm [shape: bf16[12,16,50], index: 0, kind: input, shape index: {}]
  %s1 = inlined_call_operand.hbm [shape: bf16[50,512], index: 1, kind: input, shape index: {}]
  %s2 = inlined_call_operand.hbm [shape: bf16[128,512], index: 2, kind: input, shape index: {}]
  %s3 = inlined_call_operand.vmem [shape: f32[1,512], index: 3, kind: input, shape index: {}]
  %s4 = inlined_call_operand.vmem [shape: f32[1,128], index: 4, kind: input, shape index: {}]
  %s5 = inlined_call_operand.<no memory space> [shape: f32[1,1], index: 5, kind: input, shape index: {}]
  %s6 = inlined_call_operand.vmem [shape: f32[16,1], index: 6, kind: output, shape index: {}]
  %s7 = sld [smem:[#allocation0]]
  $region77: #{tpu_custom_call.1} parent=0
    _
  %s9 = ssub.s32 1, %s7
  %s10 = scalar_select 0, %s9, %s7
  %v11 = vstv %s5
  %12 = vst [vmem:[#allocation6] sm:$0x1] %v11
  $region1: #{tpu_custom_call.1} parent=0
    #allocation7 [shape = 'u8[32768]{0}', space=vmem, size = 0x8000, scoped, tag = 'input window, operand 0']
    #allocation8 [shape = 's32[2]{0}', space=sflag, size = 0x8, scoped, tag = 'scoped memory for tpu_custom_call.1']
    #allocation9 [shape = 'u8[57344]{0}', space=vmem, size = 0xe000, scoped, tag = 'input window, operand 1, single buffered']
    #allocation10 [shape = 's32[1]{0}', space=sflag, size = 0x4, scoped, tag = 'scoped memory for tpu_custom_call.1']
    #allocation11 [shape = 'u8[131072]{0}', space=vmem, size = 0x20000, scoped, tag = 'input window, operand 2, single buffered']
    %13 = vsyncpa [#allocation8], 0
    %s14 = scalar_lea.sflag [#allocation8], 1
    %15 = vsyncpa %s14, 0
    %16 = vsyncpa [#allocation10], 0
    loop: start=0, step=1, limit=5
    $region2: #{tpu_custom_call.1} parent=1 // loop_pre_header
      _
    $region3: #{tpu_custom_call.1} parent=1 // loop_header
      %s18 = sphi 0, %s22
      %p19 = scmp.ge.s32.totalorder %s18, 5
      %s25 = sphi 0, %s37
      %s26 = sphi 0, %s33
      %s27 = sphi 0, %s25
      %s28 = sphi 0, %s26
      %s29 = sphi 0, %s27
      %s30 = sphi 0, %s28
      %s42 = sphi 0, %s44
      %s45 = sphi 0, %s42
      %s46 = sphi 0, %s45
      %s62 = sphi 0, %s46
      %s66 = sphi 0, %s66
      %s68 = sphi 0, %s66
      %s69 = sphi 0, %s68
      %s83 = sphi 0, %s69
      %s87 = sphi 0, %s87
      %s89 = sphi 0, %s87
      %s90 = sphi 0, %s89
      %s104 = sphi 0, %s90
      %s108 = sphi 0, %s108
      %s110 = sphi 0, %s108
      %s111 = sphi 0, %s110
      %s125 = sphi 0, %s111
      %s129 = sphi 0, %s129
      %s131 = sphi 0, %s129
      %s132 = sphi 0, %s131
      %s146 = sphi 0, %s132
      %s150 = sphi 0, %s150
      %s152 = sphi 0, %s150
      %s153 = sphi 0, %s152
      %s167 = sphi 0, %s153
      %s173 = sphi 0, %s175
      %s176 = sphi 0, %s173
      %s177 = sphi 0, %s176
      %s193 = sphi 0, %s177
    $region4: #{tpu_custom_call.1} parent=1 // loop_header_branch
      %21 = sbr.rel (%p19) target = $region8
    $region5: #{tpu_custom_call.1} parent=1 // loop_body
      %s23 = ssub.s32 %s18, 1
      %s24 = ssub.s32 %s18, 2
      %s31 = sadd.s32 1, %s26
      %p32 = scmp.ge.s32.totalorder %s31, 3
      %s33 = scalar_select %p32, 0, %s31
      %s34 = sadd.s32 1, %s25
      %s35 = scalar_select %p32, %s34, %s25
      %p36 = scmp.ge.s32.totalorder %s35, 1
      %s37 = scalar_select %p36, 0, %s35
      %s38 = ssub.s32 %s26, %s33
      %s39 = ssub.s32 %s25, %s37
      %s40 = sor.u32 %s38, %s39
      %p41 = scmp.eq.s32.totalorder %s40, 0
      %s43 = sadd.s32 %s42, 1
      %s44 = scalar_select %p41, %s42, %s43
      %p47 = pneg %p41
      %p48 = scmp.eq.s32.totalorder %s18, 2
      %p49 = por %p47, %p48
      %p50 = scmp.ne.s32.totalorder %s42, %s45
      %p51 = scmp.eq.s32.totalorder %s18, 0
      %p52 = por %p50, %p51
      %p53 = scmp.ne.s32.totalorder %s42, %s45
      %p54 = scmp.eq.s32.totalorder %s23, 2
      %p55 = por %p53, %p54
      %p56 = scmp.ne.s32.totalorder %s45, %s46
      %p57 = scmp.eq.s32.totalorder %s23, 0
      %p58 = por %p56, %p57
      %p59 = scmp.ne.s32.totalorder %s45, %s46
      %p60 = scmp.eq.s32.totalorder %s24, 2
      %p61 = por %p59, %p60
      %p63 = scmp.ne.s32.totalorder %s46, %s62
      %p64 = scmp.eq.s32.totalorder %s24, 0
      %p65 = por %p63, %p64
      %s67 = sadd.s32 %s66, 1
      %p70 = scmp.eq.s32.totalorder %s18, 2
      %p71 = scmp.ne.s32.totalorder %s66, %s68
      %p72 = scmp.eq.s32.totalorder %s18, 0
      %p73 = por %p71, %p72
      %p74 = scmp.ne.s32.totalorder %s66, %s68
      %p75 = scmp.eq.s32.totalorder %s23, 2
      %p76 = por %p74, %p75
      %p77 = scmp.ne.s32.totalorder %s68, %s69
      %p78 = scmp.eq.s32.totalorder %s23, 0
      %p79 = por %p77, %p78
      %p80 = scmp.ne.s32.totalorder %s68, %s69
      %p81 = scmp.eq.s32.totalorder %s24, 2
      %p82 = por %p80, %p81
      %p84 = scmp.ne.s32.totalorder %s69, %s83
      %p85 = scmp.eq.s32.totalorder %s24, 0
      %p86 = por %p84, %p85
      %s88 = sadd.s32 %s87, 1
      %p91 = scmp.eq.s32.totalorder %s18, 2
      %p92 = scmp.ne.s32.totalorder %s87, %s89
      %p93 = scmp.eq.s32.totalorder %s18, 0
      %p94 = por %p92, %p93
      %p95 = scmp.ne.s32.totalorder %s87, %s89
      %p96 = scmp.eq.s32.totalorder %s23, 2
      %p97 = por %p95, %p96
      %p98 = scmp.ne.s32.totalorder %s89, %s90
      %p99 = scmp.eq.s32.totalorder %s23, 0
      %p100 = por %p98, %p99
      %p101 = scmp.ne.s32.totalorder %s89, %s90
      %p102 = scmp.eq.s32.totalorder %s24, 2
      %p103 = por %p101, %p102
      %p105 = scmp.ne.s32.totalorder %s90, %s104
      %p106 = scmp.eq.s32.totalorder %s24, 0
      %p107 = por %p105, %p106
      %s109 = sadd.s32 %s108, 1
      %p112 = scmp.eq.s32.totalorder %s18, 2
      %p113 = scmp.ne.s32.totalorder %s108, %s110
      %p114 = scmp.eq.s32.totalorder %s18, 0
      %p115 = por %p113, %p114
      %p116 = scmp.ne.s32.totalorder %s108, %s110
      %p117 = scmp.eq.s32.totalorder %s23, 2
      %p118 = por %p116, %p117
      %p119 = scmp.ne.s32.totalorder %s110, %s111
      %p120 = scmp.eq.s32.totalorder %s23, 0
      %p121 = por %p119, %p120
      %p122 = scmp.ne.s32.totalorder %s110, %s111
      %p123 = scmp.eq.s32.totalorder %s24, 2
      %p124 = por %p122, %p123
      %p126 = scmp.ne.s32.totalorder %s111, %s125
      %p127 = scmp.eq.s32.totalorder %s24, 0
      %p128 = por %p126, %p127
      %s130 = sadd.s32 %s129, 1
      %p133 = scmp.eq.s32.totalorder %s18, 2
      %p134 = scmp.ne.s32.totalorder %s129, %s131
      %p135 = scmp.eq.s32.totalorder %s18, 0
      %p136 = por %p134, %p135
      %p137 = scmp.ne.s32.totalorder %s129, %s131
      %p138 = scmp.eq.s32.totalorder %s23, 2
      %p139 = por %p137, %p138
      %p140 = scmp.ne.s32.totalorder %s131, %s132
      %p141 = scmp.eq.s32.totalorder %s23, 0
      %p142 = por %p140, %p141
      %p143 = scmp.ne.s32.totalorder %s131, %s132
      %p144 = scmp.eq.s32.totalorder %s24, 2
      %p145 = por %p143, %p144
      %p147 = scmp.ne.s32.totalorder %s132, %s146
      %p148 = scmp.eq.s32.totalorder %s24, 0
      %p149 = por %p147, %p148
      %s151 = sadd.s32 %s150, 1
      %p154 = scmp.eq.s32.totalorder %s18, 2
      %p155 = scmp.ne.s32.totalorder %s150, %s152
      %p156 = scmp.eq.s32.totalorder %s18, 0
      %p157 = por %p155, %p156
      %p158 = scmp.ne.s32.totalorder %s150, %s152
      %p159 = scmp.eq.s32.totalorder %s23, 2
      %p160 = por %p158, %p159
      %p161 = scmp.ne.s32.totalorder %s152, %s153
      %p162 = scmp.eq.s32.totalorder %s23, 0
      %p163 = por %p161, %p162
      %p164 = scmp.ne.s32.totalorder %s152, %s153
      %p165 = scmp.eq.s32.totalorder %s24, 2
      %p166 = por %p164, %p165
      %p168 = scmp.ne.s32.totalorder %s153, %s167
      %p169 = scmp.eq.s32.totalorder %s24, 0
      %p170 = por %p168, %p169
      %s171 = ssub.s32 %s25, %s37
      %p172 = scmp.eq.s32.totalorder %s171, 0
      %s174 = sadd.s32 %s173, 1
      %s175 = scalar_select %p172, %s173, %s174
      %p178 = pneg %p172
      %p179 = scmp.eq.s32.totalorder %s18, 2
      %p180 = por %p178, %p179
      %p181 = scmp.ne.s32.totalorder %s173, %s176
      %p182 = scmp.eq.s32.totalorder %s18, 0
      %p183 = por %p181, %p182
      %p184 = scmp.ne.s32.totalorder %s173, %s176
      %p185 = scmp.eq.s32.totalorder %s23, 2
      %p186 = por %p184, %p185
      %p187 = scmp.ne.s32.totalorder %s176, %s177
      %p188 = scmp.eq.s32.totalorder %s23, 0
      %p189 = por %p187, %p188
      %p190 = scmp.ne.s32.totalorder %s176, %s177
      %p191 = scmp.eq.s32.totalorder %s24, 2
      %p192 = por %p190, %p191
      %p194 = scmp.ne.s32.totalorder %s177, %s193
      %p195 = scmp.eq.s32.totalorder %s24, 0
      %p196 = por %p194, %p195
      %p197 = scmp.le.s32.totalorder 1, %s18
      %p198 = scmp.lt.s32.totalorder %s18, 4
      %p199 = pnand %p197, %p198
      %p200 = pneg %p199
      // Predicated region
      $region9: #{tpu_custom_call.1} parent=5 // pred_check
        _
      $region10: #{tpu_custom_call.1} parent=5 // pred_check_branch
        %202 = sbr.rel (%p199) target = $region12
      $region11: #{tpu_custom_call.1} parent=5 // pred_region
        %s203 = ssub.s32 %s18, 1
        // Predicated region
        $region13: #{tpu_custom_call.1} parent=11 // pred_check
          %p204 = pneg %p79
        $region14: #{tpu_custom_call.1} parent=11 // pred_check_branch
          %206 = sbr.rel (%p204) target = $region16
        $region15: #{tpu_custom_call.1} parent=11 // pred_region
          %208 = vsyncadd [#allocation10], 0
          %s209 = sshll.u32 %s1, 4
          %s210 = int_to_ptr.hbm [resolvable:$true] %s209
          %s211 = sshll.u32 [#allocation9], 4
          %s212 = int_to_ptr.vmem [resolvable:$true] %s211
          %217 = dma.hbm_to_vmem [thread:$0]  %s210, 1792, %s212, [#allocation10], 256, 256, 16
        $region16: #{tpu_custom_call.1} parent=11 // pred_fallthru
          _
        // Predicated region
        $region17: #{tpu_custom_call.1} parent=11 // pred_check
          %p218 = pneg %p100
        $region18: #{tpu_custom_call.1} parent=11 // pred_check_branch
          %220 = sbr.rel (%p218) target = $region20
        $region19: #{tpu_custom_call.1} parent=11 // pred_region
          %222 = vsyncadd [#allocation10], 0
          %s223 = sshll.u32 %s2, 4
          %s224 = int_to_ptr.hbm [resolvable:$true] %s223
          %s225 = sshll.u32 [#allocation11], 4
          %s226 = int_to_ptr.vmem [resolvable:$true] %s225
          %231 = dma.hbm_to_vmem [thread:$0]  %s224, 4096, %s226, [#allocation10], 256, 256, 16
        $region20: #{tpu_custom_call.1} parent=11 // pred_fallthru
          _
        // Predicated region
        $region21: #{tpu_custom_call.1} parent=11 // pred_check
          %p232 = pneg %p121
        $region22: #{tpu_custom_call.1} parent=11 // pred_check_branch
          %234 = sbr.rel (%p232) target = $region24
        $region23: #{tpu_custom_call.1} parent=11 // pred_region
          _
        $region24: #{tpu_custom_call.1} parent=11 // pred_fallthru
          _
        // Predicated region
        $region25: #{tpu_custom_call.1} parent=11 // pred_check
          %p235 = pneg %p142
        $region26: #{tpu_custom_call.1} parent=11 // pred_check_branch
          %237 = sbr.rel (%p235) target = $region28
        $region27: #{tpu_custom_call.1} parent=11 // pred_region
          _
        $region28: #{tpu_custom_call.1} parent=11 // pred_fallthru
          _
        // Predicated region
        $region29: #{tpu_custom_call.1} parent=11 // pred_check
          %p238 = pneg %p163
        $region30: #{tpu_custom_call.1} parent=11 // pred_check_branch
          %240 = sbr.rel (%p238) target = $region32
        $region31: #{tpu_custom_call.1} parent=11 // pred_region
          _
        $region32: #{tpu_custom_call.1} parent=11 // pred_fallthru
          _
      $region12: #{tpu_custom_call.1} parent=5 // pred_fallthru
        _
      %p241 = scmp.lt.s32.totalorder %s18, 3
      // Predicated region
      $region33: #{tpu_custom_call.1} parent=5 // pred_check
        %p242 = pneg %p241
      $region34: #{tpu_custom_call.1} parent=5 // pred_check_branch
        %244 = sbr.rel (%p242) target = $region36
      $region35: #{tpu_custom_call.1} parent=5 // pred_region
        // Predicated region
        $region37: #{tpu_custom_call.1} parent=35 // pred_check
          %p245 = pneg %p52
        $region38: #{tpu_custom_call.1} parent=35 // pred_check_branch
          %247 = sbr.rel (%p245) target = $region40
        $region39: #{tpu_custom_call.1} parent=35 // pred_region
          %s248 = sand.u32 %s42, 1
          %s249 = scalar_lea.sflag [#allocation8], %s248
          %s250 = sand.u32 %s42, 1
          %s251 = smul.addr %s250, 32
          %s252 = scalar_lea.vmem [#allocation7], %s251
          %s253 = smul.u32 4, %s26
          %s254 = smul.u32 2, %s25
          %256 = vsyncadd %s249, 0
          %s257 = smul.addr %s253, 2
          %s258 = sadd.s32 %s254, %s257
          %s259 = smul.addr %s258, 4
          %s260 = scalar_lea.hbm %s0, %s259
          %s261 = sshll.u32 %s260, 4
          %s262 = int_to_ptr.hbm [resolvable:$true] %s261
          %s263 = sshll.u32 %s252, 4
          %s264 = int_to_ptr.vmem [resolvable:$true] %s263
          %269 = dma.hbm_to_vmem [thread:$0]  %s262, 512, %s264, %s249, 64, 64, 4
        $region40: #{tpu_custom_call.1} parent=35 // pred_fallthru
          _
      $region36: #{tpu_custom_call.1} parent=5 // pred_fallthru
        _
      %p270 = scmp.le.s32.totalorder 1, %s18
      %p271 = scmp.lt.s32.totalorder %s18, 4
      %p272 = pnand %p270, %p271
      %p273 = pneg %p272
      // Predicated region
      $region41: #{tpu_custom_call.1} parent=5 // pred_check
        _
      $region42: #{tpu_custom_call.1} parent=5 // pred_check_branch
        %275 = sbr.rel (%p272) target = $region44
      $region43: #{tpu_custom_call.1} parent=5 // pred_region
        %s276 = ssub.s32 %s18, 1
        %s277 = sand.u32 %s45, 1
        %s278 = scalar_lea.sflag [#allocation8], %s277
        %s279 = sand.u32 %s45, 1
        %s280 = smul.addr %s279, 32
        %s281 = scalar_lea.vmem [#allocation7], %s280
        // Predicated region
        $region45: #{tpu_custom_call.1} parent=43 // pred_check
          %p282 = pneg %p58
        $region46: #{tpu_custom_call.1} parent=43 // pred_check_branch
          %284 = sbr.rel (%p282) target = $region48
        $region47: #{tpu_custom_call.1} parent=43 // pred_region
          %286 = dma.done %s278, 512
        $region48: #{tpu_custom_call.1} parent=43 // pred_fallthru
          _
        // Predicated region
        $region49: #{tpu_custom_call.1} parent=43 // pred_check
          %p287 = pneg %p79
        $region50: #{tpu_custom_call.1} parent=43 // pred_check_branch
          %289 = sbr.rel (%p287) target = $region52
        $region51: #{tpu_custom_call.1} parent=43 // pred_region
          %291 = dma.done [#allocation10], 1792
        $region52: #{tpu_custom_call.1} parent=43 // pred_fallthru
          _
        // Predicated region
        $region53: #{tpu_custom_call.1} parent=43 // pred_check
          %p292 = pneg %p100
        $region54: #{tpu_custom_call.1} parent=43 // pred_check_branch
          %294 = sbr.rel (%p292) target = $region56
        $region55: #{tpu_custom_call.1} parent=43 // pred_region
          %296 = dma.done [#allocation10], 4096
        $region56: #{tpu_custom_call.1} parent=43 // pred_fallthru
          _
        %s297 = sand.u32 %s45, 1
        %s298 = scalar_lea.sflag [#allocation8], %s297
        %s299 = sand.u32 %s45, 1
        %s300 = smul.addr %s299, 32
        %s301 = scalar_lea.vmem [#allocation7], %s300
        %p302 = pneg %p58
        %p303 = pneg %p55
        %p304 = pneg %p79
        %p305 = pneg %p76
        %p306 = pneg %p100
        %p307 = pneg %p97
        %p308 = pneg %p121
        %p309 = pneg %p118
        %p310 = pneg %p142
        %p311 = pneg %p139
        %p312 = pneg %p163
        %p313 = pneg %p160
        %p314 = pneg %p189
        %p315 = pneg %p186
        %s316 = smul.u32 2, %s27
        %p317 = scmp.lt.s32.totalorder %s316, 1
        %s318 = scalar_select %p317, %s316, 1
        %s319 = smul.addr %s318, 8
        %s320 = scalar_lea.vmem %s6, %s319
        %s321 = smul.u32 4, %s28
        %s322 = smul.u32 2, %s27
        %s323 = smul.u32 2, %s27
        %p324 = scmp.lt.s32.totalorder %s323, 1
        %s325 = scalar_select %p324, %s323, 1
        %s326 = smul.addr %s325, 8
        %s327 = scalar_lea.vmem %s6, %s326
        %s328 = smul.u32 2, %s27
        %p330 = scmp.eq.s32.totalorder %s28, 0
        // Predicated region
        $region57: #{tpu_custom_call.1} parent=43 // pred_check
          %p331 = pneg %p330
        $region58: #{tpu_custom_call.1} parent=43 // pred_check_branch
          %333 = sbr.rel (%p331) target = $region60
        $region59: #{tpu_custom_call.1} parent=43 // pred_region
          %334 = vst [vmem:[#allocation2] sm:$0xff] 0.0
          %335 = vst [vmem:[#allocation2 + $0x8] sm:$0xff] 0.0
          %336 = vst [vmem:[#allocation3] sm:$0xff] 0.0
          %337 = vst [vmem:[#allocation3 + $0x8] sm:$0xff] 0.0
          %338 = vst [vmem:[#allocation4] sm:$0xff] 0.0
          %339 = vst [vmem:[#allocation4 + $0x8] sm:$0xff] 0.0
        $region60: #{tpu_custom_call.1} parent=43 // pred_fallthru
          _
        %v340 = vld [vmem:[%s281] sm:$0xf]
        %v341 = vld [vmem:[%s281 + $0x4] sm:$0xf]
        %v342 = vld [vmem:[%s281 + $0x8] sm:$0xf]
        %v343 = vld [vmem:[%s281 + $0xc] sm:$0xf]
        %v344 = vld [vmem:[%s281 + $0x10] sm:$0xf]
        %v345 = vld [vmem:[%s281 + $0x14] sm:$0xf]
        %v346 = vld [vmem:[%s281 + $0x18] sm:$0xf]
        %v347 = vld [vmem:[%s281 + $0x1c] sm:$0xf]
        %v348 = vld [vmem:[#allocation9] sm:$0xff]
        %v349 = vld [vmem:[#allocation9 + $0x8] sm:$0xff]
        %v350 = vld [vmem:[#allocation9 + $0x10] sm:$0xff]
        %v351 = vld [vmem:[#allocation9 + $0x18] sm:$0xff]
        %v352 = vld [vmem:[#allocation9 + $0x20] sm:$0xff]
        %v353 = vld [vmem:[#allocation9 + $0x28] sm:$0xff]
        %v354 = vld [vmem:[#allocation9 + $0x30] sm:$0xff]
        %v355 = vld [vmem:[#allocation9 + $0x38] sm:$0xff]
        %v356 = vld [vmem:[#allocation9 + $0x40] sm:$0xff]
        %v357 = vld [vmem:[#allocation9 + $0x48] sm:$0xff]
        %v358 = vld [vmem:[#allocation9 + $0x50] sm:$0xff]
        %v359 = vld [vmem:[#allocation9 + $0x58] sm:$0xff]
        %v360 = vld [vmem:[#allocation9 + $0x60] sm:$0x11]
        %v361 = vld [vmem:[#allocation9 + $0x68] sm:$0x11]
        %v362 = vld [vmem:[%s3] sm:$0xf]
        %v364 = vperm.slane %v362, 0
        %v365 = vperm.slane %v362, 1
        %v366 = vperm.slane %v362, 2
        %v367 = vperm.slane %v362, 3
        %v380 = vunpack.c.l.b16 %v340
        %v381 = vunpack.c.l.b16 %v341
        %v382 = vunpack.c.l.b16 %v342
        %v383 = vunpack.c.l.b16 %v343
        %v384 = vunpack.c.l.b16 %v344
        %v385 = vunpack.c.l.b16 %v345
        %v386 = vunpack.c.l.b16 %v346
        %v387 = vunpack.c.l.b16 %v347
        %v388 = vpack.c.b16 %v381, %v380
        %v389 = vpack.c.b16 %v383, %v382
        %v390 = vpack.c.b16 %v385, %v384
        %v391 = vpack.c.b16 %v387, %v386
        %v406 = vunpack.c.l.b16 %v348
        %v407 = vunpack.c.h.b16 %v348
        %v408 = vunpack.c.l.b16 %v349
        %v409 = vunpack.c.h.b16 %v349
        %v410 = vunpack.c.l.b16 %v350
        %v411 = vunpack.c.h.b16 %v350
        %v412 = vunpack.c.l.b16 %v351
        %v413 = vunpack.c.h.b16 %v351
        %v414 = vunpack.c.l.b16 %v352
        %v415 = vunpack.c.h.b16 %v352
        %v416 = vunpack.c.l.b16 %v353
        %v417 = vunpack.c.h.b16 %v353
        %v418 = vunpack.c.l.b16 %v354
        %v419 = vunpack.c.h.b16 %v354
        %v420 = vunpack.c.l.b16 %v355
        %v421 = vunpack.c.h.b16 %v355
        %v422 = vunpack.c.l.b16 %v356
        %v423 = vunpack.c.h.b16 %v356
        %v424 = vunpack.c.l.b16 %v357
        %v425 = vunpack.c.h.b16 %v357
        %v426 = vunpack.c.l.b16 %v358
        %v427 = vunpack.c.h.b16 %v358
        %v428 = vunpack.c.l.b16 %v359
        %v429 = vunpack.c.h.b16 %v359
        %v430 = vunpack.c.l.b16 %v360
        %v431 = vunpack.c.h.b16 %v360
        %v432 = vunpack.c.l.b16 %v361
        %v433 = vunpack.c.h.b16 %v361
        %v434 = vpack.c.b16 %v410, %v406
        %v435 = vpack.c.b16 %v411, %v407
        %v436 = vpack.c.b16 %v412, %v408
        %v437 = vpack.c.b16 %v413, %v409
        %v438 = vpack.c.b16 %v418, %v414
        %v439 = vpack.c.b16 %v419, %v415
        %v440 = vpack.c.b16 %v420, %v416
        %v441 = vpack.c.b16 %v421, %v417
        %v442 = vpack.c.b16 %v426, %v422
        %v443 = vpack.c.b16 %v427, %v423
        %v444 = vpack.c.b16 %v428, %v424
        %v445 = vpack.c.b16 %v429, %v425
        %v446 = vpack.c.b16 %v430, %v430
        %v447 = vpack.c.b16 %v431, %v431
        %v448 = vpack.c.b16 %v432, %v432
        %v449 = vpack.c.b16 %v433, %v433
        %vm462 = vcmask 408576
        %v464 = vsel %vm462, %v388, 0
        %v467 = vsel %vm462, %v389, 0
        %v470 = vsel %vm462, %v390, 0
        %v473 = vsel %vm462, %v391, 0
        %vm475 = vcmask 1040384
        %v477 = vsel %vm475, %v446, 0
        %v480 = vsel %vm475, %v447, 0
        %v483 = vsel %vm475, %v448, 0
        %v486 = vsel %vm475, %v449, 0
        %488 = vmatpush.bf16.msra.mxu0 0
        %489 = vmatpush.bf16.msra.mxu0 0
        %490 = vmatpush.bf16.msra.mxu0 0
        %491 = vmatpush.bf16.msra.mxu0 0
        %492 = vmatpush.bf16.msra.mxu0 %v477
        %493 = vmatpush.bf16.msra.mxu0 %v442
        %494 = vmatpush.bf16.msra.mxu0 %v438
        %495 = vmatpush.bf16.msra.mxu0 %v434
        %496 = vmatmul.bf16.gmra.mxu0 %v464
        %v497 = vpop.f32.mrf.mxu0
        %v498 = vadd.f32 %v364, %v497
        %v499 = vpop.f32.mrf.mxu0
        %v500 = vadd.f32 %v364, %v499
        %501 = vmatmul.bf16.gmra.mxu0 %v467
        %v502 = vpop.f32.mrf.mxu0
        %v503 = vadd.f32 %v364, %v502
        %v504 = vpop.f32.mrf.mxu0
        %v505 = vadd.f32 %v364, %v504
        %506 = vmatmul.bf16.gmra.mxu0 %v470
        %v507 = vpop.f32.mrf.mxu0
        %v508 = vadd.f32 %v364, %v507
        %v509 = vpop.f32.mrf.mxu0
        %v510 = vadd.f32 %v364, %v509
        %511 = vmatmul.bf16.gmra.mxu0 %v473
        %v512 = vpop.f32.mrf.mxu0
        %v513 = vadd.f32 %v364, %v512
        %v514 = vpop.f32.mrf.mxu0
        %v515 = vadd.f32 %v364, %v514
        %516 = vdwg.mxu0
        %517 = vmatpush.bf16.msra.mxu0 0
        %518 = vmatpush.bf16.msra.mxu0 0
        %519 = vmatpush.bf16.msra.mxu0 0
        %520 = vmatpush.bf16.msra.mxu0 0
        %521 = vmatpush.bf16.msra.mxu0 %v480
        %522 = vmatpush.bf16.msra.mxu0 %v443
        %523 = vmatpush.bf16.msra.mxu0 %v439
        %524 = vmatpush.bf16.msra.mxu0 %v435
        %525 = vmatmul.bf16.gmra.mxu0 %v464
        %v526 = vpop.f32.mrf.mxu0
        %v527 = vadd.f32 %v365, %v526
        %v528 = vpop.f32.mrf.mxu0
        %v529 = vadd.f32 %v365, %v528
        %530 = vmatmul.bf16.gmra.mxu0 %v467
        %v531 = vpop.f32.mrf.mxu0
        %v532 = vadd.f32 %v365, %v531
        %v533 = vpop.f32.mrf.mxu0
        %v534 = vadd.f32 %v365, %v533
        %535 = vmatmul.bf16.gmra.mxu0 %v470
        %v536 = vpop.f32.mrf.mxu0
        %v537 = vadd.f32 %v365, %v536
        %v538 = vpop.f32.mrf.mxu0
        %v539 = vadd.f32 %v365, %v538
        %540 = vmatmul.bf16.gmra.mxu0 %v473
        %v541 = vpop.f32.mrf.mxu0
        %v542 = vadd.f32 %v365, %v541
        %v543 = vpop.f32.mrf.mxu0
        %v544 = vadd.f32 %v365, %v543
        %545 = vdwg.mxu0
        %546 = vmatpush.bf16.msra.mxu0 0
        %547 = vmatpush.bf16.msra.mxu0 0
        %548 = vmatpush.bf16.msra.mxu0 0
        %549 = vmatpush.bf16.msra.mxu0 0
        %550 = vmatpush.bf16.msra.mxu0 %v483
        %551 = vmatpush.bf16.msra.mxu0 %v444
        %552 = vmatpush.bf16.msra.mxu0 %v440
        %553 = vmatpush.bf16.msra.mxu0 %v436
        %554 = vmatmul.bf16.gmra.mxu0 %v464
        %v555 = vpop.f32.mrf.mxu0
        %v556 = vadd.f32 %v366, %v555
        %v557 = vpop.f32.mrf.mxu0
        %v558 = vadd.f32 %v366, %v557
        %559 = vmatmul.bf16.gmra.mxu0 %v467
        %v560 = vpop.f32.mrf.mxu0
        %v561 = vadd.f32 %v366, %v560
        %v562 = vpop.f32.mrf.mxu0
        %v563 = vadd.f32 %v366, %v562
        %564 = vmatmul.bf16.gmra.mxu0 %v470
        %v565 = vpop.f32.mrf.mxu0
        %v566 = vadd.f32 %v366, %v565
        %v567 = vpop.f32.mrf.mxu0
        %v568 = vadd.f32 %v366, %v567
        %569 = vmatmul.bf16.gmra.mxu0 %v473
        %v570 = vpop.f32.mrf.mxu0
        %v571 = vadd.f32 %v366, %v570
        %v572 = vpop.f32.mrf.mxu0
        %v573 = vadd.f32 %v366, %v572
        %574 = vdwg.mxu0
        %575 = vmatpush.bf16.msra.mxu0 0
        %576 = vmatpush.bf16.msra.mxu0 0
        %577 = vmatpush.bf16.msra.mxu0 0
        %578 = vmatpush.bf16.msra.mxu0 0
        %579 = vmatpush.bf16.msra.mxu0 %v486
        %580 = vmatpush.bf16.msra.mxu0 %v445
        %581 = vmatpush.bf16.msra.mxu0 %v441
        %582 = vmatpush.bf16.msra.mxu0 %v437
        %583 = vmatmul.bf16.gmra.mxu0 %v464
        %v584 = vpop.f32.mrf.mxu0
        %v585 = vadd.f32 %v367, %v584
        %v586 = vpop.f32.mrf.mxu0
        %v587 = vadd.f32 %v367, %v586
        %588 = vmatmul.bf16.gmra.mxu0 %v467
        %v589 = vpop.f32.mrf.mxu0
        %v590 = vadd.f32 %v367, %v589
        %v591 = vpop.f32.mrf.mxu0
        %v592 = vadd.f32 %v367, %v591
        %593 = vmatmul.bf16.gmra.mxu0 %v470
        %v594 = vpop.f32.mrf.mxu0
        %v595 = vadd.f32 %v367, %v594
        %v596 = vpop.f32.mrf.mxu0
        %v597 = vadd.f32 %v367, %v596
        %598 = vmatmul.bf16.gmra.mxu0 %v473
        %v599 = vpop.f32.mrf.mxu0
        %v600 = vadd.f32 %v367, %v599
        %v601 = vpop.f32.mrf.mxu0
        %v602 = vadd.f32 %v367, %v601
        %603 = vdwg.mxu0
        %604 = vst [vmem:[#allocation5] sm:$0xff] %v498
        %605 = vst [vmem:[#allocation5 + $0x8] sm:$0xff] %v527
        %606 = vst [vmem:[#allocation5 + $0x10] sm:$0xff] %v556
        %607 = vst [vmem:[#allocation5 + $0x18] sm:$0xff] %v585
        %608 = vst [vmem:[#allocation5 + $0x20] sm:$0xff] %v500
        %609 = vst [vmem:[#allocation5 + $0x28] sm:$0xff] %v529
        %610 = vst [vmem:[#allocation5 + $0x30] sm:$0xff] %v558
        %611 = vst [vmem:[#allocation5 + $0x38] sm:$0xff] %v587
        %612 = vst [vmem:[#allocation5 + $0x40] sm:$0xff] %v503
        %613 = vst [vmem:[#allocation5 + $0x48] sm:$0xff] %v532
        %614 = vst [vmem:[#allocation5 + $0x50] sm:$0xff] %v561
        %615 = vst [vmem:[#allocation5 + $0x58] sm:$0xff] %v590
        %616 = vst [vmem:[#allocation5 + $0x60] sm:$0xff] %v505
        %617 = vst [vmem:[#allocation5 + $0x68] sm:$0xff] %v534
        %618 = vst [vmem:[#allocation5 + $0x70] sm:$0xff] %v563
        %619 = vst [vmem:[#allocation5 + $0x78] sm:$0xff] %v592
        %620 = vst [vmem:[#allocation5 + $0x80] sm:$0xff] %v508
        %621 = vst [vmem:[#allocation5 + $0x88] sm:$0xff] %v537
        %622 = vst [vmem:[#allocation5 + $0x90] sm:$0xff] %v566
        %623 = vst [vmem:[#allocation5 + $0x98] sm:$0xff] %v595
        %624 = vst [vmem:[#allocation5 + $0xa0] sm:$0xff] %v510
        %625 = vst [vmem:[#allocation5 + $0xa8] sm:$0xff] %v539
        %626 = vst [vmem:[#allocation5 + $0xb0] sm:$0xff] %v568
        %627 = vst [vmem:[#allocation5 + $0xb8] sm:$0xff] %v597
        %628 = vst [vmem:[#allocation5 + $0xc0] sm:$0xff] %v513
        %629 = vst [vmem:[#allocation5 + $0xc8] sm:$0xff] %v542
        %630 = vst [vmem:[#allocation5 + $0xd0] sm:$0xff] %v571
        %631 = vst [vmem:[#allocation5 + $0xd8] sm:$0xff] %v600
        %632 = vst [vmem:[#allocation5 + $0xe0] sm:$0xff] %v515
        %633 = vst [vmem:[#allocation5 + $0xe8] sm:$0xff] %v544
        %634 = vst [vmem:[#allocation5 + $0xf0] sm:$0xff] %v573
        %635 = vst [vmem:[#allocation5 + $0xf8] sm:$0xff] %v602
        %v636 = vld [vmem:[#allocation11] sm:$0xff]
        %v637 = vld [vmem:[#allocation11 + $0x8] sm:$0xff]
        %v638 = vld [vmem:[#allocation11 + $0x10] sm:$0xff]
        %v639 = vld [vmem:[#allocation11 + $0x18] sm:$0xff]
        %v640 = vld [vmem:[#allocation11 + $0x20] sm:$0xff]
        %v641 = vld [vmem:[#allocation11 + $0x28] sm:$0xff]
        %v642 = vld [vmem:[#allocation11 + $0x30] sm:$0xff]
        %v643 = vld [vmem:[#allocation11 + $0x38] sm:$0xff]
        %v644 = vld [vmem:[#allocation11 + $0x40] sm:$0xff]
        %v645 = vld [vmem:[#allocation11 + $0x48] sm:$0xff]
        %v646 = vld [vmem:[#allocation11 + $0x50] sm:$0xff]
        %v647 = vld [vmem:[#allocation11 + $0x58] sm:$0xff]
        %v648 = vld [vmem:[#allocation11 + $0x60] sm:$0xff]
        %v649 = vld [vmem:[#allocation11 + $0x68] sm:$0xff]
        %v650 = vld [vmem:[#allocation11 + $0x70] sm:$0xff]
        %v651 = vld [vmem:[#allocation11 + $0x78] sm:$0xff]
        %v652 = vld [vmem:[#allocation11 + $0x80] sm:$0xff]
        %v653 = vld [vmem:[#allocation11 + $0x88] sm:$0xff]
        %v654 = vld [vmem:[#allocation11 + $0x90] sm:$0xff]
        %v655 = vld [vmem:[#allocation11 + $0x98] sm:$0xff]
        %v656 = vld [vmem:[#allocation11 + $0xa0] sm:$0xff]
        %v657 = vld [vmem:[#allocation11 + $0xa8] sm:$0xff]
        %v658 = vld [vmem:[#allocation11 + $0xb0] sm:$0xff]
        %v659 = vld [vmem:[#allocation11 + $0xb8] sm:$0xff]
        %v660 = vld [vmem:[#allocation11 + $0xc0] sm:$0xff]
        %v661 = vld [vmem:[#allocation11 + $0xc8] sm:$0xff]
        %v662 = vld [vmem:[#allocation11 + $0xd0] sm:$0xff]
        %v663 = vld [vmem:[#allocation11 + $0xd8] sm:$0xff]
        %v664 = vld [vmem:[#allocation11 + $0xe0] sm:$0xff]
        %v665 = vld [vmem:[#allocation11 + $0xe8] sm:$0xff]
        %v666 = vld [vmem:[#allocation11 + $0xf0] sm:$0xff]
        %v667 = vld [vmem:[#allocation11 + $0xf8] sm:$0xff]
        %s668 = smul.u32 %s28, 4
        %v669 = vld [vmem:[#allocation2] sm:$0xff]
        %v670 = vld [vmem:[#allocation2 + $0x8] sm:$0xff]
        %v671 = vld [vmem:[#allocation3] sm:$0xff]
        %v672 = vld [vmem:[#allocation3 + $0x8] sm:$0xff]
        %v673 = vld [vmem:[#allocation4] sm:$0xff]
        %v674 = vld [vmem:[#allocation4 + $0x8] sm:$0xff]
        %s675 = smul.u32 0, 4
        %s676 = smul.addr %s675, 8
        %s677 = scalar_lea.vmem [#allocation5], %s676
        %v678 = vld [vmem:[%s677] sm:$0xff]
        %v679 = vld [vmem:[%s677 + $0x8] sm:$0xff]
        %v680 = vld [vmem:[%s677 + $0x10] sm:$0xff]
        %v681 = vld [vmem:[%s677 + $0x18] sm:$0xff]
        %v682 = vld [vmem:[%s677 + $0x20] sm:$0xff]
        %v683 = vld [vmem:[%s677 + $0x28] sm:$0xff]
        %v684 = vld [vmem:[%s677 + $0x30] sm:$0xff]
        %v685 = vld [vmem:[%s677 + $0x38] sm:$0xff]
        %v686 = vpack.c.bf16 %v670, %v669
        %v719 = vunpack.c.l.b16 %v636
        %v720 = vunpack.c.h.b16 %v636
        %v721 = vunpack.c.l.b16 %v637
        %v722 = vunpack.c.h.b16 %v637
        %v723 = vunpack.c.l.b16 %v638
        %v724 = vunpack.c.h.b16 %v638
        %v725 = vunpack.c.l.b16 %v639
        %v726 = vunpack.c.h.b16 %v639
        %v727 = vunpack.c.l.b16 %v640
        %v728 = vunpack.c.h.b16 %v640
        %v729 = vunpack.c.l.b16 %v641
        %v730 = vunpack.c.h.b16 %v641
        %v731 = vunpack.c.l.b16 %v642
        %v732 = vunpack.c.h.b16 %v642
        %v733 = vunpack.c.l.b16 %v643
        %v734 = vunpack.c.h.b16 %v643
        %v735 = vunpack.c.l.b16 %v644
        %v736 = vunpack.c.h.b16 %v644
        %v737 = vunpack.c.l.b16 %v645
        %v738 = vunpack.c.h.b16 %v645
        %v739 = vunpack.c.l.b16 %v646
        %v740 = vunpack.c.h.b16 %v646
        %v741 = vunpack.c.l.b16 %v647
        %v742 = vunpack.c.h.b16 %v647
        %v743 = vunpack.c.l.b16 %v648
        %v744 = vunpack.c.h.b16 %v648
        %v745 = vunpack.c.l.b16 %v649
        %v746 = vunpack.c.h.b16 %v649
        %v747 = vunpack.c.l.b16 %v650
        %v748 = vunpack.c.h.b16 %v650
        %v749 = vunpack.c.l.b16 %v651
        %v750 = vunpack.c.h.b16 %v651
        %v751 = vunpack.c.l.b16 %v652
        %v752 = vunpack.c.h.b16 %v652
        %v753 = vunpack.c.l.b16 %v653
        %v754 = vunpack.c.h.b16 %v653
        %v755 = vunpack.c.l.b16 %v654
        %v756 = vunpack.c.h.b16 %v654
        %v757 = vunpack.c.l.b16 %v655
        %v758 = vunpack.c.h.b16 %v655
        %v759 = vunpack.c.l.b16 %v656
        %v760 = vunpack.c.h.b16 %v656
        %v761 = vunpack.c.l.b16 %v657
        %v762 = vunpack.c.h.b16 %v657
        %v763 = vunpack.c.l.b16 %v658
        %v764 = vunpack.c.h.b16 %v658
        %v765 = vunpack.c.l.b16 %v659
        %v766 = vunpack.c.h.b16 %v659
        %v767 = vunpack.c.l.b16 %v660
        %v768 = vunpack.c.h.b16 %v660
        %v769 = vunpack.c.l.b16 %v661
        %v770 = vunpack.c.h.b16 %v661
        %v771 = vunpack.c.l.b16 %v662
        %v772 = vunpack.c.h.b16 %v662
        %v773 = vunpack.c.l.b16 %v663
        %v774 = vunpack.c.h.b16 %v663
        %v775 = vunpack.c.l.b16 %v664
        %v776 = vunpack.c.h.b16 %v664
        %v777 = vunpack.c.l.b16 %v665
        %v778 = vunpack.c.h.b16 %v665
        %v779 = vunpack.c.l.b16 %v666
        %v780 = vunpack.c.h.b16 %v666
        %v781 = vunpack.c.l.b16 %v667
        %v782 = vunpack.c.h.b16 %v667
        %v783 = vpack.c.b16 %v723, %v719
        %v784 = vpack.c.b16 %v724, %v720
        %v785 = vpack.c.b16 %v725, %v721
        %v786 = vpack.c.b16 %v726, %v722
        %v787 = vpack.c.b16 %v731, %v727
        %v788 = vpack.c.b16 %v732, %v728
        %v789 = vpack.c.b16 %v733, %v729
        %v790 = vpack.c.b16 %v734, %v730
        %v791 = vpack.c.b16 %v739, %v735
        %v792 = vpack.c.b16 %v740, %v736
        %v793 = vpack.c.b16 %v741, %v737
        %v794 = vpack.c.b16 %v742, %v738
        %v795 = vpack.c.b16 %v747, %v743
        %v796 = vpack.c.b16 %v748, %v744
        %v797 = vpack.c.b16 %v749, %v745
        %v798 = vpack.c.b16 %v750, %v746
        %v799 = vpack.c.b16 %v755, %v751
        %v800 = vpack.c.b16 %v756, %v752
        %v801 = vpack.c.b16 %v757, %v753
        %v802 = vpack.c.b16 %v758, %v754
        %v803 = vpack.c.b16 %v763, %v759
        %v804 = vpack.c.b16 %v764, %v760
        %v805 = vpack.c.b16 %v765, %v761
        %v806 = vpack.c.b16 %v766, %v762
        %v807 = vpack.c.b16 %v771, %v767
        %v808 = vpack.c.b16 %v772, %v768
        %v809 = vpack.c.b16 %v773, %v769
        %v810 = vpack.c.b16 %v774, %v770
        %v811 = vpack.c.b16 %v779, %v775
        %v812 = vpack.c.b16 %v780, %v776
        %v813 = vpack.c.b16 %v781, %v777
        %v814 = vpack.c.b16 %v782, %v778
        %847 = vmatpush.bf16.msra.mxu0 %v811
        %848 = vmatpush.bf16.msra.mxu0 %v807
        %849 = vmatpush.bf16.msra.mxu0 %v803
        %850 = vmatpush.bf16.msra.mxu0 %v799
        %851 = vmatpush.bf16.msra.mxu0 %v795
        %852 = vmatpush.bf16.msra.mxu0 %v791
        %853 = vmatpush.bf16.msra.mxu0 %v787
        %854 = vmatpush.bf16.msra.mxu0 %v783
        %855 = vmatmul.bf16.gmra.mxu0 %v686
        %v856 = vpop.f32.mrf.mxu0
        %v857 = vadd.f32 0.0, %v856
        %v858 = vpop.f32.mrf.mxu0
        %v859 = vadd.f32 0.0, %v858
        %860 = vdwg.mxu0
        %861 = vmatpush.bf16.msra.mxu0 %v812
        %862 = vmatpush.bf16.msra.mxu0 %v808
        %863 = vmatpush.bf16.msra.mxu0 %v804
        %864 = vmatpush.bf16.msra.mxu0 %v800
        %865 = vmatpush.bf16.msra.mxu0 %v796
        %866 = vmatpush.bf16.msra.mxu0 %v792
        %867 = vmatpush.bf16.msra.mxu0 %v788
        %868 = vmatpush.bf16.msra.mxu0 %v784
        %869 = vmatmul.bf16.gmra.mxu0 %v686
        %v870 = vpop.f32.mrf.mxu0
        %v871 = vadd.f32 0.0, %v870
        %v872 = vpop.f32.mrf.mxu0
        %v873 = vadd.f32 0.0, %v872
        %874 = vdwg.mxu0
        %875 = vmatpush.bf16.msra.mxu0 %v813
        %876 = vmatpush.bf16.msra.mxu0 %v809
        %877 = vmatpush.bf16.msra.mxu0 %v805
        %878 = vmatpush.bf16.msra.mxu0 %v801
        %879 = vmatpush.bf16.msra.mxu0 %v797
        %880 = vmatpush.bf16.msra.mxu0 %v793
        %881 = vmatpush.bf16.msra.mxu0 %v789
        %882 = vmatpush.bf16.msra.mxu0 %v785
        %883 = vmatmul.bf16.gmra.mxu0 %v686
        %v884 = vpop.f32.mrf.mxu0
        %v885 = vadd.f32 0.0, %v884
        %v886 = vpop.f32.mrf.mxu0
        %v887 = vadd.f32 0.0, %v886
        %888 = vdwg.mxu0
        %889 = vmatpush.bf16.msra.mxu0 %v814
        %890 = vmatpush.bf16.msra.mxu0 %v810
        %891 = vmatpush.bf16.msra.mxu0 %v806
        %892 = vmatpush.bf16.msra.mxu0 %v802
        %893 = vmatpush.bf16.msra.mxu0 %v798
        %894 = vmatpush.bf16.msra.mxu0 %v794
        %895 = vmatpush.bf16.msra.mxu0 %v790
        %896 = vmatpush.bf16.msra.mxu0 %v786
        %897 = vmatmul.bf16.gmra.mxu0 %v686
        %v898 = vpop.f32.mrf.mxu0
        %v899 = vadd.f32 0.0, %v898
        %v900 = vpop.f32.mrf.mxu0
        %v901 = vadd.f32 0.0, %v900
        %902 = vdwg.mxu0
        %v903 = vadd.f32 %v678, %v857
        %v904 = vadd.f32 %v679, %v871
        %v905 = vadd.f32 %v680, %v885
        %v906 = vadd.f32 %v681, %v899
        %v907 = vadd.f32 %v682, %v859
        %v908 = vadd.f32 %v683, %v873
        %v909 = vadd.f32 %v684, %v887
        %v910 = vadd.f32 %v685, %v901
        %v911 = vmul.f32 %v903, 0.5
        %v912 = vmul.f32 %v907, 0.5
        %v913 = vtanh.pop %v911
        %v914 = vtanh.pop %v912
        %v915 = vmul.f32 %v913, 0.5
        %v916 = vmul.f32 %v914, 0.5
        %v917 = vadd.f32 %v915, 0.5
        %v918 = vadd.f32 %v916, 0.5
        %v919 = vmul.f32 %v904, 0.5
        %v920 = vmul.f32 %v908, 0.5
        %v921 = vtanh.pop %v919
        %v922 = vtanh.pop %v920
        %v923 = vmul.f32 %v921, 0.5
        %v924 = vmul.f32 %v922, 0.5
        %v925 = vadd.f32 %v923, 0.5
        %v926 = vadd.f32 %v924, 0.5
        %v927 = vtanh.pop %v905
        %v928 = vtanh.pop %v909
        %v929 = vmul.f32 %v906, 0.5
        %v930 = vmul.f32 %v910, 0.5
        %v931 = vtanh.pop %v929
        %v932 = vtanh.pop %v930
        %v933 = vmul.f32 %v931, 0.5
        %v934 = vmul.f32 %v932, 0.5
        %v935 = vadd.f32 %v933, 0.5
        %v936 = vadd.f32 %v934, 0.5
        %v937 = vmul.f32 %v925, %v671
        %v938 = vmul.f32 %v926, %v672
        %v939 = vmul.f32 %v917, %v927
        %v940 = vmul.f32 %v918, %v928
        %v941 = vadd.f32 %v937, %v939
        %v942 = vadd.f32 %v938, %v940
        %v943 = vtanh.pop %v941
        %v944 = vtanh.pop %v942
        %v945 = vmul.f32 %v935, %v943
        %v946 = vmul.f32 %v936, %v944
        %p947 = scmp.lt.s32.totalorder %s668, 10
        %s948 = scalar_select %p947, 1, 0
        %v949 = vstv %s948
        %vm950 = vcmp.eq.s32.totalorder %v949, 1
        %v951 = vsel %vm950, %v945, %v669
        %v952 = vsel %vm950, %v946, %v670
        %v953 = vsel %vm950, %v941, %v671
        %v954 = vsel %vm950, %v942, %v672
        %v955 = vadd.f32 %v673, %v951
        %v956 = vadd.f32 %v674, %v952
        %v957 = vsel %vm950, %v955, %v673
        %v958 = vsel %vm950, %v956, %v674
        %s959 = smul.u32 2, 4
        %s960 = smul.addr %s959, 8
        %s961 = scalar_lea.vmem [#allocation5], %s960
        %v962 = vld [vmem:[%s961] sm:$0xff]
        %v963 = vld [vmem:[%s961 + $0x8] sm:$0xff]
        %v964 = vld [vmem:[%s961 + $0x10] sm:$0xff]
        %v965 = vld [vmem:[%s961 + $0x18] sm:$0xff]
        %v966 = vld [vmem:[%s961 + $0x20] sm:$0xff]
        %v967 = vld [vmem:[%s961 + $0x28] sm:$0xff]
        %v968 = vld [vmem:[%s961 + $0x30] sm:$0xff]
        %v969 = vld [vmem:[%s961 + $0x38] sm:$0xff]
        %v970 = vpack.c.bf16 %v952, %v951
        %971 = vmatpush.bf16.msra.mxu0 %v811
        %972 = vmatpush.bf16.msra.mxu0 %v807
        %973 = vmatpush.bf16.msra.mxu0 %v803
        %974 = vmatpush.bf16.msra.mxu0 %v799
        %975 = vmatpush.bf16.msra.mxu0 %v795
        %976 = vmatpush.bf16.msra.mxu0 %v791
        %977 = vmatpush.bf16.msra.mxu0 %v787
        %978 = vmatpush.bf16.msra.mxu0 %v783
        %979 = vmatmul.bf16.gmra.mxu0 %v970
        %v980 = vpop.f32.mrf.mxu0
        %v981 = vadd.f32 0.0, %v980
        %v982 = vpop.f32.mrf.mxu0
        %v983 = vadd.f32 0.0, %v982
        %984 = vdwg.mxu0
        %985 = vmatpush.bf16.msra.mxu0 %v812
        %986 = vmatpush.bf16.msra.mxu0 %v808
        %987 = vmatpush.bf16.msra.mxu0 %v804
        %988 = vmatpush.bf16.msra.mxu0 %v800
        %989 = vmatpush.bf16.msra.mxu0 %v796
        %990 = vmatpush.bf16.msra.mxu0 %v792
        %991 = vmatpush.bf16.msra.mxu0 %v788
        %992 = vmatpush.bf16.msra.mxu0 %v784
        %993 = vmatmul.bf16.gmra.mxu0 %v970
        %v994 = vpop.f32.mrf.mxu0
        %v995 = vadd.f32 0.0, %v994
        %v996 = vpop.f32.mrf.mxu0
        %v997 = vadd.f32 0.0, %v996
        %998 = vdwg.mxu0
        %999 = vmatpush.bf16.msra.mxu0 %v813
        %1000 = vmatpush.bf16.msra.mxu0 %v809
        %1001 = vmatpush.bf16.msra.mxu0 %v805
        %1002 = vmatpush.bf16.msra.mxu0 %v801
        %1003 = vmatpush.bf16.msra.mxu0 %v797
        %1004 = vmatpush.bf16.msra.mxu0 %v793
        %1005 = vmatpush.bf16.msra.mxu0 %v789
        %1006 = vmatpush.bf16.msra.mxu0 %v785
        %1007 = vmatmul.bf16.gmra.mxu0 %v970
        %v1008 = vpop.f32.mrf.mxu0
        %v1009 = vadd.f32 0.0, %v1008
        %v1010 = vpop.f32.mrf.mxu0
        %v1011 = vadd.f32 0.0, %v1010
        %1012 = vdwg.mxu0
        %1013 = vmatpush.bf16.msra.mxu0 %v814
        %1014 = vmatpush.bf16.msra.mxu0 %v810
        %1015 = vmatpush.bf16.msra.mxu0 %v806
        %1016 = vmatpush.bf16.msra.mxu0 %v802
        %1017 = vmatpush.bf16.msra.mxu0 %v798
        %1018 = vmatpush.bf16.msra.mxu0 %v794
        %1019 = vmatpush.bf16.msra.mxu0 %v790
        %1020 = vmatpush.bf16.msra.mxu0 %v786
        %1021 = vmatmul.bf16.gmra.mxu0 %v970
        %v1022 = vpop.f32.mrf.mxu0
        %v1023 = vadd.f32 0.0, %v1022
        %v1024 = vpop.f32.mrf.mxu0
        %v1025 = vadd.f32 0.0, %v1024
        %1026 = vdwg.mxu0
        %v1027 = vadd.f32 %v962, %v981
        %v1028 = vadd.f32 %v963, %v995
        %v1029 = vadd.f32 %v964, %v1009
        %v1030 = vadd.f32 %v965, %v1023
        %v1031 = vadd.f32 %v966, %v983
        %v1032 = vadd.f32 %v967, %v997
        %v1033 = vadd.f32 %v968, %v1011
        %v1034 = vadd.f32 %v969, %v1025
        %v1035 = vmul.f32 %v1027, 0.5
        %v1036 = vmul.f32 %v1031, 0.5
        %v1037 = vtanh.pop %v1035
        %v1038 = vtanh.pop %v1036
        %v1039 = vmul.f32 %v1037, 0.5
        %v1040 = vmul.f32 %v1038, 0.5
        %v1041 = vadd.f32 %v1039, 0.5
        %v1042 = vadd.f32 %v1040, 0.5
        %v1043 = vmul.f32 %v1028, 0.5
        %v1044 = vmul.f32 %v1032, 0.5
        %v1045 = vtanh.pop %v1043
        %v1046 = vtanh.pop %v1044
        %v1047 = vmul.f32 %v1045, 0.5
        %v1048 = vmul.f32 %v1046, 0.5
        %v1049 = vadd.f32 %v1047, 0.5
        %v1050 = vadd.f32 %v1048, 0.5
        %v1051 = vtanh.pop %v1029
        %v1052 = vtanh.pop %v1033
        %v1053 = vmul.f32 %v1030, 0.5
        %v1054 = vmul.f32 %v1034, 0.5
        %v1055 = vtanh.pop %v1053
        %v1056 = vtanh.pop %v1054
        %v1057 = vmul.f32 %v1055, 0.5
        %v1058 = vmul.f32 %v1056, 0.5
        %v1059 = vadd.f32 %v1057, 0.5
        %v1060 = vadd.f32 %v1058, 0.5
        %v1061 = vmul.f32 %v1049, %v953
        %v1062 = vmul.f32 %v1050, %v954
        %v1063 = vmul.f32 %v1041, %v1051
        %v1064 = vmul.f32 %v1042, %v1052
        %v1065 = vadd.f32 %v1061, %v1063
        %v1066 = vadd.f32 %v1062, %v1064
        %v1067 = vtanh.pop %v1065
        %v1068 = vtanh.pop %v1066
        %v1069 = vmul.f32 %v1059, %v1067
        %v1070 = vmul.f32 %v1060, %v1068
        %s1071 = sadd.s32 %s668, 1
        %p1072 = scmp.lt.s32.totalorder %s1071, 10
        %s1073 = scalar_select %p1072, 1, 0
        %v1074 = vstv %s1073
        %vm1075 = vcmp.eq.s32.totalorder %v1074, 1
        %v1076 = vsel %vm1075, %v1069, %v951
        %v1077 = vsel %vm1075, %v1070, %v952
        %v1078 = vsel %vm1075, %v1065, %v953
        %v1079 = vsel %vm1075, %v1066, %v954
        %v1080 = vadd.f32 %v957, %v1076
        %v1081 = vadd.f32 %v958, %v1077
        %v1082 = vsel %vm1075, %v1080, %v957
        %v1083 = vsel %vm1075, %v1081, %v958
        %s1084 = smul.u32 4, 4
        %s1085 = smul.addr %s1084, 8
        %s1086 = scalar_lea.vmem [#allocation5], %s1085
        %v1087 = vld [vmem:[%s1086] sm:$0xff]
        %v1088 = vld [vmem:[%s1086 + $0x8] sm:$0xff]
        %v1089 = vld [vmem:[%s1086 + $0x10] sm:$0xff]
        %v1090 = vld [vmem:[%s1086 + $0x18] sm:$0xff]
        %v1091 = vld [vmem:[%s1086 + $0x20] sm:$0xff]
        %v1092 = vld [vmem:[%s1086 + $0x28] sm:$0xff]
        %v1093 = vld [vmem:[%s1086 + $0x30] sm:$0xff]
        %v1094 = vld [vmem:[%s1086 + $0x38] sm:$0xff]
        %v1095 = vpack.c.bf16 %v1077, %v1076
        %1096 = vmatpush.bf16.msra.mxu0 %v811
        %1097 = vmatpush.bf16.msra.mxu0 %v807
        %1098 = vmatpush.bf16.msra.mxu0 %v803
        %1099 = vmatpush.bf16.msra.mxu0 %v799
        %1100 = vmatpush.bf16.msra.mxu0 %v795
        %1101 = vmatpush.bf16.msra.mxu0 %v791
        %1102 = vmatpush.bf16.msra.mxu0 %v787
        %1103 = vmatpush.bf16.msra.mxu0 %v783
        %1104 = vmatmul.bf16.gmra.mxu0 %v1095
        %v1105 = vpop.f32.mrf.mxu0
        %v1106 = vadd.f32 0.0, %v1105
        %v1107 = vpop.f32.mrf.mxu0
        %v1108 = vadd.f32 0.0, %v1107
        %1109 = vdwg.mxu0
        %1110 = vmatpush.bf16.msra.mxu0 %v812
        %1111 = vmatpush.bf16.msra.mxu0 %v808
        %1112 = vmatpush.bf16.msra.mxu0 %v804
        %1113 = vmatpush.bf16.msra.mxu0 %v800
        %1114 = vmatpush.bf16.msra.mxu0 %v796
        %1115 = vmatpush.bf16.msra.mxu0 %v792
        %1116 = vmatpush.bf16.msra.mxu0 %v788
        %1117 = vmatpush.bf16.msra.mxu0 %v784
        %1118 = vmatmul.bf16.gmra.mxu0 %v1095
        %v1119 = vpop.f32.mrf.mxu0
        %v1120 = vadd.f32 0.0, %v1119
        %v1121 = vpop.f32.mrf.mxu0
        %v1122 = vadd.f32 0.0, %v1121
        %1123 = vdwg.mxu0
        %1124 = vmatpush.bf16.msra.mxu0 %v813
        %1125 = vmatpush.bf16.msra.mxu0 %v809
        %1126 = vmatpush.bf16.msra.mxu0 %v805
        %1127 = vmatpush.bf16.msra.mxu0 %v801
        %1128 = vmatpush.bf16.msra.mxu0 %v797
        %1129 = vmatpush.bf16.msra.mxu0 %v793
        %1130 = vmatpush.bf16.msra.mxu0 %v789
        %1131 = vmatpush.bf16.msra.mxu0 %v785
        %1132 = vmatmul.bf16.gmra.mxu0 %v1095
        %v1133 = vpop.f32.mrf.mxu0
        %v1134 = vadd.f32 0.0, %v1133
        %v1135 = vpop.f32.mrf.mxu0
        %v1136 = vadd.f32 0.0, %v1135
        %1137 = vdwg.mxu0
        %1138 = vmatpush.bf16.msra.mxu0 %v814
        %1139 = vmatpush.bf16.msra.mxu0 %v810
        %1140 = vmatpush.bf16.msra.mxu0 %v806
        %1141 = vmatpush.bf16.msra.mxu0 %v802
        %1142 = vmatpush.bf16.msra.mxu0 %v798
        %1143 = vmatpush.bf16.msra.mxu0 %v794
        %1144 = vmatpush.bf16.msra.mxu0 %v790
        %1145 = vmatpush.bf16.msra.mxu0 %v786
        %1146 = vmatmul.bf16.gmra.mxu0 %v1095
        %v1147 = vpop.f32.mrf.mxu0
        %v1148 = vadd.f32 0.0, %v1147
        %v1149 = vpop.f32.mrf.mxu0
        %v1150 = vadd.f32 0.0, %v1149
        %1151 = vdwg.mxu0
        %v1152 = vadd.f32 %v1087, %v1106
        %v1153 = vadd.f32 %v1088, %v1120
        %v1154 = vadd.f32 %v1089, %v1134
        %v1155 = vadd.f32 %v1090, %v1148
        %v1156 = vadd.f32 %v1091, %v1108
        %v1157 = vadd.f32 %v1092, %v1122
        %v1158 = vadd.f32 %v1093, %v1136
        %v1159 = vadd.f32 %v1094, %v1150
        %v1160 = vmul.f32 %v1152, 0.5
        %v1161 = vmul.f32 %v1156, 0.5
        %v1162 = vtanh.pop %v1160
        %v1163 = vtanh.pop %v1161
        %v1164 = vmul.f32 %v1162, 0.5
        %v1165 = vmul.f32 %v1163, 0.5
        %v1166 = vadd.f32 %v1164, 0.5
        %v1167 = vadd.f32 %v1165, 0.5
        %v1168 = vmul.f32 %v1153, 0.5
        %v1169 = vmul.f32 %v1157, 0.5
        %v1170 = vtanh.pop %v1168
        %v1171 = vtanh.pop %v1169
        %v1172 = vmul.f32 %v1170, 0.5
        %v1173 = vmul.f32 %v1171, 0.5
        %v1174 = vadd.f32 %v1172, 0.5
        %v1175 = vadd.f32 %v1173, 0.5
        %v1176 = vtanh.pop %v1154
        %v1177 = vtanh.pop %v1158
        %v1178 = vmul.f32 %v1155, 0.5
        %v1179 = vmul.f32 %v1159, 0.5
        %v1180 = vtanh.pop %v1178
        %v1181 = vtanh.pop %v1179
        %v1182 = vmul.f32 %v1180, 0.5
        %v1183 = vmul.f32 %v1181, 0.5
        %v1184 = vadd.f32 %v1182, 0.5
        %v1185 = vadd.f32 %v1183, 0.5
        %v1186 = vmul.f32 %v1174, %v1078
        %v1187 = vmul.f32 %v1175, %v1079
        %v1188 = vmul.f32 %v1166, %v1176
        %v1189 = vmul.f32 %v1167, %v1177
        %v1190 = vadd.f32 %v1186, %v1188
        %v1191 = vadd.f32 %v1187, %v1189
        %v1192 = vtanh.pop %v1190
        %v1193 = vtanh.pop %v1191
        %v1194 = vmul.f32 %v1184, %v1192
        %v1195 = vmul.f32 %v1185, %v1193
        %s1196 = sadd.s32 %s668, 2
        %p1197 = scmp.lt.s32.totalorder %s1196, 10
        %s1198 = scalar_select %p1197, 1, 0
        %v1199 = vstv %s1198
        %vm1200 = vcmp.eq.s32.totalorder %v1199, 1
        %v1201 = vsel %vm1200, %v1194, %v1076
        %v1202 = vsel %vm1200, %v1195, %v1077
        %v1203 = vsel %vm1200, %v1190, %v1078
        %v1204 = vsel %vm1200, %v1191, %v1079
        %v1205 = vadd.f32 %v1082, %v1201
        %v1206 = vadd.f32 %v1083, %v1202
        %v1207 = vsel %vm1200, %v1205, %v1082
        %v1208 = vsel %vm1200, %v1206, %v1083
        %s1209 = smul.u32 6, 4
        %s1210 = smul.addr %s1209, 8
        %s1211 = scalar_lea.vmem [#allocation5], %s1210
        %v1212 = vld [vmem:[%s1211] sm:$0xff]
        %v1213 = vld [vmem:[%s1211 + $0x8] sm:$0xff]
        %v1214 = vld [vmem:[%s1211 + $0x10] sm:$0xff]
        %v1215 = vld [vmem:[%s1211 + $0x18] sm:$0xff]
        %v1216 = vld [vmem:[%s1211 + $0x20] sm:$0xff]
        %v1217 = vld [vmem:[%s1211 + $0x28] sm:$0xff]
        %v1218 = vld [vmem:[%s1211 + $0x30] sm:$0xff]
        %v1219 = vld [vmem:[%s1211 + $0x38] sm:$0xff]
        %v1220 = vpack.c.bf16 %v1202, %v1201
        %1221 = vmatpush.bf16.msra.mxu0 %v811
        %1222 = vmatpush.bf16.msra.mxu0 %v807
        %1223 = vmatpush.bf16.msra.mxu0 %v803
        %1224 = vmatpush.bf16.msra.mxu0 %v799
        %1225 = vmatpush.bf16.msra.mxu0 %v795
        %1226 = vmatpush.bf16.msra.mxu0 %v791
        %1227 = vmatpush.bf16.msra.mxu0 %v787
        %1228 = vmatpush.bf16.msra.mxu0 %v783
        %1229 = vmatmul.bf16.gmra.mxu0 %v1220
        %v1230 = vpop.f32.mrf.mxu0
        %v1231 = vadd.f32 0.0, %v1230
        %v1232 = vpop.f32.mrf.mxu0
        %v1233 = vadd.f32 0.0, %v1232
        %1234 = vdwg.mxu0
        %1235 = vmatpush.bf16.msra.mxu0 %v812
        %1236 = vmatpush.bf16.msra.mxu0 %v808
        %1237 = vmatpush.bf16.msra.mxu0 %v804
        %1238 = vmatpush.bf16.msra.mxu0 %v800
        %1239 = vmatpush.bf16.msra.mxu0 %v796
        %1240 = vmatpush.bf16.msra.mxu0 %v792
        %1241 = vmatpush.bf16.msra.mxu0 %v788
        %1242 = vmatpush.bf16.msra.mxu0 %v784
        %1243 = vmatmul.bf16.gmra.mxu0 %v1220
        %v1244 = vpop.f32.mrf.mxu0
        %v1245 = vadd.f32 0.0, %v1244
        %v1246 = vpop.f32.mrf.mxu0
        %v1247 = vadd.f32 0.0, %v1246
        %1248 = vdwg.mxu0
        %1249 = vmatpush.bf16.msra.mxu0 %v813
        %1250 = vmatpush.bf16.msra.mxu0 %v809
        %1251 = vmatpush.bf16.msra.mxu0 %v805
        %1252 = vmatpush.bf16.msra.mxu0 %v801
        %1253 = vmatpush.bf16.msra.mxu0 %v797
        %1254 = vmatpush.bf16.msra.mxu0 %v793
        %1255 = vmatpush.bf16.msra.mxu0 %v789
        %1256 = vmatpush.bf16.msra.mxu0 %v785
        %1257 = vmatmul.bf16.gmra.mxu0 %v1220
        %v1258 = vpop.f32.mrf.mxu0
        %v1259 = vadd.f32 0.0, %v1258
        %v1260 = vpop.f32.mrf.mxu0
        %v1261 = vadd.f32 0.0, %v1260
        %1262 = vdwg.mxu0
        %1263 = vmatpush.bf16.msra.mxu0 %v814
        %1264 = vmatpush.bf16.msra.mxu0 %v810
        %1265 = vmatpush.bf16.msra.mxu0 %v806
        %1266 = vmatpush.bf16.msra.mxu0 %v802
        %1267 = vmatpush.bf16.msra.mxu0 %v798
        %1268 = vmatpush.bf16.msra.mxu0 %v794
        %1269 = vmatpush.bf16.msra.mxu0 %v790
        %1270 = vmatpush.bf16.msra.mxu0 %v786
        %1271 = vmatmul.bf16.gmra.mxu0 %v1220
        %v1272 = vpop.f32.mrf.mxu0
        %v1273 = vadd.f32 0.0, %v1272
        %v1274 = vpop.f32.mrf.mxu0
        %v1275 = vadd.f32 0.0, %v1274
        %1276 = vdwg.mxu0
        %v1277 = vadd.f32 %v1212, %v1231
        %v1278 = vadd.f32 %v1213, %v1245
        %v1279 = vadd.f32 %v1214, %v1259
        %v1280 = vadd.f32 %v1215, %v1273
        %v1281 = vadd.f32 %v1216, %v1233
        %v1282 = vadd.f32 %v1217, %v1247
        %v1283 = vadd.f32 %v1218, %v1261
        %v1284 = vadd.f32 %v1219, %v1275
        %v1285 = vmul.f32 %v1277, 0.5
        %v1286 = vmul.f32 %v1281, 0.5
        %v1287 = vtanh.pop %v1285
        %v1288 = vtanh.pop %v1286
        %v1289 = vmul.f32 %v1287, 0.5
        %v1290 = vmul.f32 %v1288, 0.5
        %v1291 = vadd.f32 %v1289, 0.5
        %v1292 = vadd.f32 %v1290, 0.5
        %v1293 = vmul.f32 %v1278, 0.5
        %v1294 = vmul.f32 %v1282, 0.5
        %v1295 = vtanh.pop %v1293
        %v1296 = vtanh.pop %v1294
        %v1297 = vmul.f32 %v1295, 0.5
        %v1298 = vmul.f32 %v1296, 0.5
        %v1299 = vadd.f32 %v1297, 0.5
        %v1300 = vadd.f32 %v1298, 0.5
        %v1301 = vtanh.pop %v1279
        %v1302 = vtanh.pop %v1283
        %v1303 = vmul.f32 %v1280, 0.5
        %v1304 = vmul.f32 %v1284, 0.5
        %v1305 = vtanh.pop %v1303
        %v1306 = vtanh.pop %v1304
        %v1307 = vmul.f32 %v1305, 0.5
        %v1308 = vmul.f32 %v1306, 0.5
        %v1309 = vadd.f32 %v1307, 0.5
        %v1310 = vadd.f32 %v1308, 0.5
        %v1311 = vmul.f32 %v1299, %v1203
        %v1312 = vmul.f32 %v1300, %v1204
        %v1313 = vmul.f32 %v1291, %v1301
        %v1314 = vmul.f32 %v1292, %v1302
        %v1315 = vadd.f32 %v1311, %v1313
        %v1316 = vadd.f32 %v1312, %v1314
        %v1317 = vtanh.pop %v1315
        %v1318 = vtanh.pop %v1316
        %v1319 = vmul.f32 %v1309, %v1317
        %v1320 = vmul.f32 %v1310, %v1318
        %s1321 = sadd.s32 %s668, 3
        %p1322 = scmp.lt.s32.totalorder %s1321, 10
        %s1323 = scalar_select %p1322, 1, 0
        %v1324 = vstv %s1323
        %vm1325 = vcmp.eq.s32.totalorder %v1324, 1
        %v1326 = vsel %vm1325, %v1319, %v1201
        %v1327 = vsel %vm1325, %v1320, %v1202
        %v1328 = vsel %vm1325, %v1315, %v1203
        %v1329 = vsel %vm1325, %v1316, %v1204
        %v1330 = vadd.f32 %v1207, %v1326
        %v1331 = vadd.f32 %v1208, %v1327
        %v1332 = vsel %vm1325, %v1330, %v1207
        %v1333 = vsel %vm1325, %v1331, %v1208
        %1334 = vst [vmem:[#allocation2] sm:$0xff] %v1326
        %1335 = vst [vmem:[#allocation2 + $0x8] sm:$0xff] %v1327
        %1336 = vst [vmem:[#allocation3] sm:$0xff] %v1328
        %1337 = vst [vmem:[#allocation3 + $0x8] sm:$0xff] %v1329
        %1338 = vst [vmem:[#allocation4] sm:$0xff] %v1332
        %1339 = vst [vmem:[#allocation4 + $0x8] sm:$0xff] %v1333
        %p1340 = scmp.eq.s32.totalorder %s28, 2
        // Predicated region
        $region61: #{tpu_custom_call.1} parent=43 // pred_check
          %p1341 = pneg %p1340
        $region62: #{tpu_custom_call.1} parent=43 // pred_check_branch
          %1343 = sbr.rel (%p1341) target = $region64
        $region63: #{tpu_custom_call.1} parent=43 // pred_region
          %v1344 = vmul.f32 %v1332, 0.1
          %v1345 = vmul.f32 %v1333, 0.1
          %v1346 = vld [vmem:[%s4] sm:$0x1]
          %v1348 = vperm.slane %v1346, 0
          %v1350 = vmul.f32 %v1344, %v1348
          %v1351 = vmul.f32 %v1345, %v1348
          %1352 = vadd.xlane.f32.xlu0 %v1350
          %v1353 = vpop.xlane.xlu0 %1352
          %1354 = vadd.xlane.f32.xlu0 %v1351
          %v1355 = vpop.xlane.xlu0 %1354
          %v1356 = vld [vmem:[#allocation6] sm:$0x1]
          %v1358 = vperm.slane %v1356, 0
          %v1360 = vadd.f32 %v1353, %v1358
          %v1361 = vadd.f32 %v1355, %v1358
          %v1362 = vxor.u32 %v1360, 2147483648
          %v1363 = vxor.u32 %v1361, 2147483648
          %v1364 = vmul.f32 %v1362, 1.442695
          %v1365 = vpow.pop %v1364
          %v1366 = vmul.f32 %v1363, 1.442695
          %v1367 = vpow.pop %v1366
          %v1368 = vadd.f32 %v1365, 1.0
          %v1369 = vadd.f32 %v1367, 1.0
          %v1370 = vrcp.pop %v1368
          %v1371 = vmul.f32 %v1368, %v1370
          %v1372 = vsub.f32 1.0, %v1371
          %v1373 = vmul.f32 %v1370, %v1372
          %v1374 = vadd.f32 %v1370, %v1373
          %vm1375 = vweird.f32 %v1368
          %vm1376 = vweird.f32 %v1370
          %vm1377 = vmor %vm1375, %vm1376
          %v1378 = vsel %vm1377, %v1370, %v1374
          %v1379 = vand.u32 2147483647, %v1368
          %vm1380 = vcmp.eq.f32.partialorder %v1379, 8.507059e+37
          %v1381 = vand.u32 %v1368, 2147483648
          %v1382 = vor.u32 1.1754944e-38, %v1381
          %v1383 = vsel %vm1380, %v1382, %v1378
          %v1384 = vmul.f32 1.0, %v1383
          %v1385 = vrcp.pop %v1369
          %v1386 = vmul.f32 %v1369, %v1385
          %v1387 = vsub.f32 1.0, %v1386
          %v1388 = vmul.f32 %v1385, %v1387
          %v1389 = vadd.f32 %v1385, %v1388
          %vm1390 = vweird.f32 %v1369
          %vm1391 = vweird.f32 %v1385
          %vm1392 = vmor %vm1390, %vm1391
          %v1393 = vsel %vm1392, %v1385, %v1389
          %v1394 = vand.u32 2147483647, %v1369
          %vm1395 = vcmp.eq.f32.partialorder %v1394, 8.507059e+37
          %v1396 = vand.u32 %v1369, 2147483648
          %v1397 = vor.u32 1.1754944e-38, %v1396
          %v1398 = vsel %vm1395, %v1397, %v1393
          %v1399 = vmul.f32 1.0, %v1398
          %vm1400 = vcmask 7168
          %1401 = vst.msk [vmem:[%s327] sm:$0xff] %vm1400, %v1384
          %1402 = vst.msk [vmem:[%s327 + $0x8] sm:$0xff] %vm1400, %v1399
        $region64: #{tpu_custom_call.1} parent=43 // pred_fallthru
          _
        %s1403 = smul.u32 2, %s27
        %p1404 = scmp.lt.s32.totalorder %s1403, 1
        %s1405 = scalar_select %p1404, %s1403, 1
        %s1406 = smul.addr %s1405, 8
        %s1407 = scalar_lea.vmem %s6, %s1406
        // Predicated region
        $region65: #{tpu_custom_call.1} parent=43 // pred_check
          %p1408 = pneg %p186
        $region66: #{tpu_custom_call.1} parent=43 // pred_check_branch
          %1410 = sbr.rel (%p1408) target = $region68
        $region67: #{tpu_custom_call.1} parent=43 // pred_region
          %s1411 = smul.u32 2, %s27
        $region68: #{tpu_custom_call.1} parent=43 // pred_fallthru
          _
        // Predicated region
        $region69: #{tpu_custom_call.1} parent=43 // pred_check
          %p1412 = pneg %p186
        $region70: #{tpu_custom_call.1} parent=43 // pred_check_branch
          %1414 = sbr.rel (%p1412) target = $region72
        $region71: #{tpu_custom_call.1} parent=43 // pred_region
          %s1415 = smul.u32 2, %s27
          %p1416 = scmp.lt.s32.totalorder %s1415, 1
          %s1417 = scalar_select %p1416, %s1415, 1
          %s1418 = smul.addr %s1417, 8
          %s1419 = scalar_lea.vmem %s6, %s1418
        $region72: #{tpu_custom_call.1} parent=43 // pred_fallthru
          _
      $region44: #{tpu_custom_call.1} parent=5 // pred_fallthru
        _
      %p1420 = scmp.le.s32.totalorder 2, %s18
      // Predicated region
      $region73: #{tpu_custom_call.1} parent=5 // pred_check
        %p1421 = pneg %p1420
      $region74: #{tpu_custom_call.1} parent=5 // pred_check_branch
        %1423 = sbr.rel (%p1421) target = $region76
      $region75: #{tpu_custom_call.1} parent=5 // pred_region
        %s1424 = ssub.s32 %s18, 2
      $region76: #{tpu_custom_call.1} parent=5 // pred_fallthru
        _
    $region6: #{tpu_custom_call.1} parent=1 // loop_footer
      %s22 = sadd.s32 1, %s18
    $region7: #{tpu_custom_call.1} parent=1 // loop_footer_branch
      %17 = sbr.rel target = $region3
    $region8: #{tpu_custom_call.1} parent=1 // loop_exit
      _
    %1425 = vsyncpa [#allocation8], 1
    %s1426 = scalar_lea.sflag [#allocation8], 1
    %1427 = vsyncpa %s1426, 1
    %1428 = vsyncpa [#allocation10], 1

</llo_original>
